<compile_context>
chip_gen: v7x
topology: tpu7x:2x2x1
jax: 0.10.0
libtpu: 0.0.40
codegen_flags: <defaults>
</compile_context>

<pallas_src>
import jax
import jax.numpy as jnp
import numpy as np
from jax import lax
from jax.experimental import pallas as pl
from jax.experimental.pallas import tpu as pltpu


# ---------------------------------------------------------------------------
# Kernels
# ---------------------------------------------------------------------------
def _make_ctx_kernel(d_v, S, scale, n_key_chunks):
    """Attention kernel that only writes the context (encoder path).

    Deferred softmax normalization + key-axis chunking so exp (EUP) of chunk i
    overlaps the attn@V matmul (MXU) of chunk i-1.
    """
    kc = S // n_key_chunks

    def kernel(q_ref, k_ref, v_ref, ctx_ref):
        q = q_ref[...]                                   # (Hblk, TQ, d_k)
        k = k_ref[...]                                   # (Hblk, S,  d_k)
        v = v_ref[...]                                   # (Hblk, S,  d_v)

        # scores = Q @ K^T contracting the last dims (no K transpose).
        scores = lax.dot_general(
            q, k, dimension_numbers=(((2,), (2,)), ((0,), (0,))),
            preferred_element_type=jnp.float32)          # (Hblk, TQ, S) f32
        if scale != 1.0:                                 # standalone API only;
            scores = scores * jnp.float32(scale)         # encoder folds into W_Q

        m = jnp.max(scores, axis=-1, keepdims=True)
        hblk, tq = scores.shape[0], scores.shape[1]
        acc = jnp.zeros((hblk, tq, d_v), jnp.float32)
        denom = jnp.zeros((hblk, tq, 1), jnp.float32)
        for c in range(n_key_chunks):                    # static unroll
            s_c = scores[:, :, c * kc:(c + 1) * kc]
            e_c = jnp.exp(s_c - m)                       # EUP
            denom = denom + jnp.sum(e_c, axis=-1, keepdims=True)
            acc = acc + lax.dot_general(                 # MXU, f32 accumulation
                e_c.astype(v.dtype), v[:, c * kc:(c + 1) * kc, :],
                dimension_numbers=(((2,), (1,)), ((0,), (0,))),
                preferred_element_type=jnp.float32)

        # Deferred normalization: O(TQ*d_v) instead of O(TQ*S).
        ctx = acc * pl.reciprocal(denom, approx=False)
        ctx_ref[...] = ctx.astype(ctx_ref.dtype)

    return kernel


def _make_probs_kernel(scale):
    """Attention kernel that also writes the (normalized) probabilities."""

    def kernel(q_ref, k_ref, v_ref, ctx_ref, attn_ref):
        q = q_ref[...]
        k = k_ref[...]
        v = v_ref[...]

        scores = lax.dot_general(
            q, k, dimension_numbers=(((2,), (2,)), ((0,), (0,))),
            preferred_element_type=jnp.float32)
        if scale != 1.0:
            scores = scores * jnp.float32(scale)

        m = jnp.max(scores, axis=-1, keepdims=True)
        e = jnp.exp(scores - m)
        denom = jnp.sum(e, axis=-1, keepdims=True)
        inv = pl.reciprocal(denom, approx=False)
        attn = e * inv                                   # (Hblk, TQ, S) f32

        ctx = lax.dot_general(
            attn.astype(v.dtype), v,
            dimension_numbers=(((2,), (1,)), ((0,), (0,))),
            preferred_element_type=jnp.float32)

        ctx_ref[...] = ctx.astype(ctx_ref.dtype)
        attn_ref[...] = attn.astype(attn_ref.dtype)

    return kernel


# ---------------------------------------------------------------------------
# Tiling / VMEM helpers
# ---------------------------------------------------------------------------
def _round_up(x, m):
    return ((x + m - 1) // m) * m


def _tile_bytes(rows, cols, dtype):
    """VMEM footprint of a (rows, cols) tile including lane/sublane padding."""
    itemsize = jnp.dtype(dtype).itemsize
    sub = 8 * max(1, 4 // itemsize)          # 8-row tiles (f32) / 16 (bf16)
    return _round_up(rows, sub) * _round_up(cols, 128) * itemsize


def _block_vmem_bytes(hb, TQ, S, d_k, d_v, in_dtype, out_dtype, attn_dtype,
                      return_attn, kv_bufs):
    # Pipelined (double- or single-buffered) DMA blocks.
    io = 2 * hb * _tile_bytes(TQ, d_k, in_dtype)             # Q
    io += kv_bufs * hb * _tile_bytes(S, d_k, in_dtype)       # K
    io += kv_bufs * hb * _tile_bytes(S, d_v, in_dtype)       # V
    io += 2 * hb * _tile_bytes(TQ, d_v, out_dtype)           # ctx
    if return_attn:
        io += 2 * hb * _tile_bytes(TQ, S, attn_dtype)        # attn probs
    # Intermediates: scores + exp in f32, probs copy in V's dtype, f32 acc.
    interm = hb * (2 * _tile_bytes(TQ, S, jnp.float32)
                   + _tile_bytes(TQ, S, in_dtype)
                   + _tile_bytes(TQ, d_v, jnp.float32))
    if return_attn:
        interm += hb * _tile_bytes(TQ, S, jnp.float32)       # normalized attn
    return io + interm


def _vmem_budget():
    """(estimator budget, vmem_limit_bytes) derived from the chip's VMEM."""
    cap = 64 * 1024 * 1024                    # conservative fallback (v7x)
    try:
        cap = int(pltpu.get_tpu_info().vmem_capacity_bytes)
    except Exception:
        pass
    return int(cap * 0.65), int(cap * 0.75)


def _pick_q_tile(S, cap=256):
    """Largest query tile <= cap that is a multiple of 8 and divides S."""
    if S <= cap:
        return S
    candidates = [t for t in range(8, cap + 1, 8) if S % t == 0]
    return max(candidates) if candidates else S


def _pick_head_tile(BH, S, TQ, d_k, d_v, in_dtype, out_dtype, attn_dtype,
                    return_attn, kv_bufs, budget):
    """Largest head tile dividing BH, within the VMEM budget, leaving >= 2
    grid points on the head axis (megacore / 2-TC sharding) when possible."""
    cap = BH if BH == 1 else max(1, BH // 2)
    best = 1
    for hb in range(1, cap + 1):
        if BH % hb != 0:
            continue
        if _block_vmem_bytes(hb, TQ, S, d_k, d_v, in_dtype, out_dtype,
                             attn_dtype, return_attn, kv_bufs) <= budget:
            best = hb
    return best


def _pick_key_chunks(S):
    """Number of 128-aligned key chunks (>=256 wide) for exp/MXU interleave."""
    for n in (8, 4, 2):
        if S % (n * 256) == 0:
            return n
    return 1


# One-time capability probe for pipeline_mode=pl.Buffered(1) (single-buffered
# K/V).  Falls back to default double-buffering if unsupported.
_BUFFERED1_OK = None


def _buffered1_supported():
    global _BUFFERED1_OK
    if _BUFFERED1_OK is None:
        try:
            spec = pl.BlockSpec((8, 128), lambda i: (i, 0),
                                pipeline_mode=pl.Buffered(1))

            def _copy(x_ref, o_ref):
                o_ref[...] = x_ref[...]

            out = pl.pallas_call(
                _copy,
                out_shape=jax.ShapeDtypeStruct((16, 128), jnp.float32),
                grid=(2,),
                in_specs=[spec],
                out_specs=pl.BlockSpec((8, 128), lambda i: (i, 0)),
            )(jnp.zeros((16, 128), jnp.float32))
            jax.block_until_ready(out)
            _BUFFERED1_OK = True
        except Exception:
            _BUFFERED1_OK = False
    return _BUFFERED1_OK


def _kv_block_spec(shape, index_map, single_buffer):
    if single_buffer:
        try:
            return pl.BlockSpec(shape, index_map, pipeline_mode=pl.Buffered(1))
        except TypeError:           # BlockSpec without pipeline_mode kwarg
            pass
    return pl.BlockSpec(shape, index_map)


# ---------------------------------------------------------------------------
# Wrapper: ScaledDotProductAttention forward
# ---------------------------------------------------------------------------
def scaled_dot_product_attention(Q, K, V, *, scale=None, return_attn=True,
                                 attn_dtype=None, q_tile=None, head_tile=None):
    """Q, K: [B, H, S, d_k]; V: [B, H, S, d_v].

    Returns (context, attn) when return_attn=True (PyTorch semantics), else
    (context, None) and the O(S^2) attention matrix is never materialized.
    """
    B, H, S, d_k = Q.shape
    d_v = V.shape[-1]
    BH = B * H

    out_dtype = Q.dtype
    if scale is None:
        scale = 1.0 / float(np.sqrt(d_k))
    scale = float(scale)
    if attn_dtype is None:
        attn_dtype = jnp.bfloat16      # halve the S^2 writeback even for f32 in

    q = Q.reshape(BH, S, d_k)
    k = K.reshape(BH, S, d_k)
    v = V.reshape(BH, S, d_v)

    TQ = q_tile or _pick_q_tile(S)
    q_tiles = S // TQ

    # K/V blocks only change with the outer head index; single-buffer them
    # when the q axis is tiled to reclaim VMEM for bigger tiles.
    kv_single = (q_tiles >= 2) and _buffered1_supported()
    kv_bufs = 1 if kv_single else 2

    budget, vmem_limit = _vmem_budget()
    Hblk = head_tile or _pick_head_tile(BH, S, TQ, d_k, d_v, q.dtype, out_dtype,
                                        attn_dtype, return_attn, kv_bufs, budget)
    grid = (BH // Hblk, q_tiles)

    q_spec = pl.BlockSpec((Hblk, TQ, d_k), lambda h, qi: (h, qi, 0))
    k_spec = _kv_block_spec((Hblk, S, d_k), lambda h, qi: (h, 0, 0), kv_single)
    v_spec = _kv_block_spec((Hblk, S, d_v), lambda h, qi: (h, 0, 0), kv_single)
    ctx_spec = pl.BlockSpec((Hblk, TQ, d_v), lambda h, qi: (h, qi, 0))

    itemsize = jnp.dtype(q.dtype).itemsize
    flops = 2 * BH * S * S * (d_k + d_v)
    bytes_accessed = (BH * S * (2 * d_k + d_v) * itemsize
                      + BH * S * d_v * jnp.dtype(out_dtype).itemsize)
    if return_attn:
        bytes_accessed += BH * S * S * jnp.dtype(attn_dtype).itemsize
    cost = pl.CostEstimate(flops=flops, transcendentals=BH * S * S,
                           bytes_accessed=bytes_accessed)

    compiler_params = pltpu.CompilerParams(
        # Shard the head axis (disjoint K/V per core); q axis is serial.
        dimension_semantics=("parallel", "arbitrary"),
        vmem_limit_bytes=vmem_limit)

    if return_attn:
        kernel = _make_probs_kernel(scale)
        ctx, attn = pl.pallas_call(
            kernel,
            out_shape=(jax.ShapeDtypeStruct((BH, S, d_v), out_dtype),
                       jax.ShapeDtypeStruct((BH, S, S), attn_dtype)),
            grid_spec=pltpu.PrefetchScalarGridSpec(
                num_scalar_prefetch=0, grid=grid,
                in_specs=[q_spec, k_spec, v_spec],
                out_specs=[ctx_spec,
                           pl.BlockSpec((Hblk, TQ, S), lambda h, qi: (h, qi, 0))]),
            compiler_params=compiler_params,
            cost_estimate=cost,
        )(q, k, v)
        return ctx.reshape(B, H, S, d_v), attn.reshape(B, H, S, S)

    kernel = _make_ctx_kernel(d_v, S, scale, _pick_key_chunks(S))
    ctx = pl.pallas_call(
        kernel,
        out_shape=jax.ShapeDtypeStruct((BH, S, d_v), out_dtype),
        grid_spec=pltpu.PrefetchScalarGridSpec(
            num_scalar_prefetch=0, grid=grid,
            in_specs=[q_spec, k_spec, v_spec],
            out_specs=ctx_spec),
        compiler_params=compiler_params,
        cost_estimate=cost,
    )(q, k, v)
    return ctx.reshape(B, H, S, d_v), None


# ---------------------------------------------------------------------------
# Pure-JAX reference and encoder glue (plain XLA around the Pallas kernel)
# ---------------------------------------------------------------------------
def _reference_attention(Q, K, V, scale=None):
    d_k = Q.shape[-1]
    if scale is None:
        scale = 1.0 / float(np.sqrt(d_k))
    Qf, Kf, Vf = (a.astype(jnp.float32) for a in (Q, K, V))
    scores = jnp.einsum("bhqd,bhkd->bhqk", Qf, Kf,
                        precision=lax.Precision.HIGHEST) * scale
    attn = jax.nn.softmax(scores, axis=-1)
    ctx = jnp.einsum("bhqk,bhkd->bhqd", attn, Vf,
                     precision=lax.Precision.HIGHEST)
    return ctx.astype(Q.dtype), attn


def _layer_norm(x, g, b, eps=1e-5):
    mu = jnp.mean(x, axis=-1, keepdims=True)
    var = jnp.mean(jnp.square(x - mu), axis=-1, keepdims=True)
    return (x - mu) * lax.rsqrt(var + eps) * g + b


def _init_encoder_params(key, n_layers, d_model, n_heads, d_k, d_v, d_ff):
    params = []
    for _ in range(n_layers):
        key, k1, k2, k3, k4, k5, k6 = jax.random.split(key, 7)
        s = 1.0 / np.sqrt(d_model)
        params.append({
            "w_q": jax.random.normal(k1, (d_model, n_heads * d_k), jnp.float32) * s,
            "w_k": jax.random.normal(k2, (d_model, n_heads * d_k), jnp.float32) * s,
            "w_v": jax.random.normal(k3, (d_model, n_heads * d_v), jnp.float32) * s,
            "w_o": jax.random.normal(k4, (n_heads * d_v, d_model), jnp.float32)
                   * (1.0 / np.sqrt(n_heads * d_v)),
            "w_ff1": jax.random.normal(k5, (d_model, d_ff), jnp.float32) * s,
            "w_ff2": jax.random.normal(k6, (d_ff, d_model), jnp.float32)
                     * (1.0 / np.sqrt(d_ff)),
            "ln1_g": jnp.ones((d_model,), jnp.float32),
            "ln1_b": jnp.zeros((d_model,), jnp.float32),
            "ln2_g": jnp.ones((d_model,), jnp.float32),
            "ln2_b": jnp.zeros((d_model,), jnp.float32),
        })
    return params


def _encoder_layer(p, x, n_heads, d_k, d_v, use_pallas, attn_compute_dtype):
    B, S, _ = x.shape
    scale = float(1.0 / np.sqrt(d_k))
    # MultiHeadAttention (biases zero-initialized and omitted).
    # Fold 1/sqrt(d_k) into W_Q: free, and avoids scaling Q in bf16.
    q = (x @ (p["w_q"] * scale)).reshape(B, S, n_heads, d_k).transpose(0, 2, 1, 3)
    k = (x @ p["w_k"]).reshape(B, S, n_heads, d_k).transpose(0, 2, 1, 3)
    v = (x @ p["w_v"]).reshape(B, S, n_heads, d_v).transpose(0, 2, 1, 3)
    if attn_compute_dtype is not None:
        q, k, v = (a.astype(attn_compute_dtype) for a in (q, k, v))
    if use_pallas:
        # Attention probabilities are discarded by Encoder.forward -> skip the
        # O(S^2) writeback entirely.
        ctx, _ = scaled_dot_product_attention(q, k, v, scale=1.0, return_attn=False)
    else:
        ctx, _ = _reference_attention(q, k, v, scale=1.0)
    ctx = ctx.astype(x.dtype)
    # TODO(synk): have the kernel emit ctx as (B, S, H*d_v) (lane-dense store)
    #             and delete this transpose.
    ctx = ctx.transpose(0, 2, 1, 3).reshape(B, S, n_heads * d_v)
    out = _layer_norm(ctx @ p["w_o"] + x, p["ln1_g"], p["ln1_b"])
    # PoswiseFeedForwardNet: Conv1d(kernel_size=1) == per-position Linear.
    h = jnp.maximum(out @ p["w_ff1"], 0.0)
    ff = h @ p["w_ff2"]
    return _layer_norm(ff + out, p["ln2_g"], p["ln2_b"])


def _encoder_forward(params, enc_inputs, n_heads, d_k, d_v, use_pallas=True,
                     attn_compute_dtype=jnp.bfloat16):
    enc_outputs = enc_inputs
    # Faithful to the reference Encoder.forward: every layer consumes the
    # ORIGINAL enc_inputs (layers are not chained); last layer's output returned.
    for p in params:
        enc_outputs = _encoder_layer(p, enc_inputs, n_heads, d_k, d_v,
                                     use_pallas, attn_compute_dtype)
    return enc_outputs


# ---------------------------------------------------------------------------
# Demo / self-check
# ---------------------------------------------------------------------------
if __name__ == "__main__":
    key = jax.random.PRNGKey(0)
    kq, kk, kv, kenc, kparam = jax.random.split(key, 5)

    # 1) f32 attention with probabilities requested (f32 writeback, tight check)
    B, H, S, d_k, d_v = 2, 4, 128, 64, 64
    Q = jax.random.normal(kq, (B, H, S, d_k), dtype=jnp.float32)
    K = jax.random.normal(kk, (B, H, S, d_k), dtype=jnp.float32)
    V = jax.random.normal(kv, (B, H, S, d_v), dtype=jnp.float32)
    ctx, attn = scaled_dot_product_attention(Q, K, V, attn_dtype=jnp.float32)
    jax.block_until_ready((ctx, attn))
    ref_ctx, ref_attn = _reference_attention(Q, K, V)
    np.testing.assert_allclose(np.asarray(ctx), np.asarray(ref_ctx),
                               rtol=2e-3, atol=2e-3)
    np.testing.assert_allclose(np.asarray(attn), np.asarray(ref_attn),
                               rtol=2e-3, atol=2e-3)

    # 2) bf16 inputs with the default (bf16) probability writeback
    Qb, Kb, Vb = (a.astype(jnp.bfloat16) for a in (Q, K, V))
    ctx_b, attn_b = scaled_dot_product_attention(Qb, Kb, Vb)
    jax.block_until_ready((ctx_b, attn_b))
    ref_ctx_b, ref_attn_b = _reference_attention(Qb, Kb, Vb)
    np.testing.assert_allclose(np.asarray(attn_b.astype(jnp.float32)),
                               np.asarray(ref_attn_b), rtol=2e-2, atol=2e-2)
    np.testing.assert_allclose(np.asarray(ctx_b.astype(jnp.float32)),
                               np.asarray(ref_ctx_b.astype(jnp.float32)),
                               rtol=5e-2, atol=1e-1)

    # 3) ctx-only path at S=512: q tiling, single-buffered K/V (if supported),
    #    key-chunked exp/MXU interleave, deferred normalization.
    B3, H3, S3 = 1, 2, 512
    Q3 = jax.random.normal(kq, (B3, H3, S3, d_k), dtype=jnp.float32)
    K3 = jax.random.normal(kk, (B3, H3, S3, d_k), dtype=jnp.float32)
    V3 = jax.random.normal(kv, (B3, H3, S3, d_v), dtype=jnp.float32)
    ctx3, attn3 = scaled_dot_product_attention(Q3, K3, V3, return_attn=False)
    assert attn3 is None
    jax.block_until_ready(ctx3)
    ref_ctx3, _ = _reference_attention(Q3, K3, V3)
    np.testing.assert_allclose(np.asarray(ctx3), np.asarray(ref_ctx3),
                               rtol=2e-3, atol=2e-3)

    # 4) Full Encoder forward (2 layers) with the Pallas attention inside.
    n_layers, d_model, n_heads2, dk2, dv2, d_ff, S2, B2 = 2, 32, 4, 8, 8, 64, 16, 2
    params = _init_encoder_params(kparam, n_layers, d_model, n_heads2, dk2, dv2, d_ff)
    enc_inputs = jax.random.normal(kenc, (B2, S2, d_model), dtype=jnp.float32)

    # 4a) faithful f32 attention path (tight)
    enc_out_f32 = _encoder_forward(params, enc_inputs, n_heads2, dk2, dv2,
                                   use_pallas=True, attn_compute_dtype=None)
    jax.block_until_ready(enc_out_f32)
    enc_ref_f32 = _encoder_forward(params, enc_inputs, n_heads2, dk2, dv2,
                                   use_pallas=False, attn_compute_dtype=None)
    np.testing.assert_allclose(np.asarray(enc_out_f32), np.asarray(enc_ref_f32),
                               rtol=2e-3, atol=2e-3)

    # 4b) default bf16-attention path (both sides use the same bf16 cast)
    enc_out_bf16 = _encoder_forward(params, enc_inputs, n_heads2, dk2, dv2,
                                    use_pallas=True)
    jax.block_until_ready(enc_out_bf16)
    enc_ref_bf16 = _encoder_forward(params, enc_inputs, n_heads2, dk2, dv2,
                                    use_pallas=False)
    np.testing.assert_allclose(np.asarray(enc_out_bf16), np.asarray(enc_ref_bf16),
                               rtol=2e-2, atol=2e-2)

    print("KERNEL_OK")
</pallas_src>

<mosaic_0001>
module attributes {stable_mosaic.version = 11 : i64} {
  func.func @kernel(%arg0: i32, %arg1: i32, %arg2: memref<4x128x64xf32, #tpu.memory_space<vmem>>, %arg3: memref<4x128x64xf32, #tpu.memory_space<vmem>>, %arg4: memref<4x128x64xf32, #tpu.memory_space<vmem>>, %arg5: memref<4x128x64xf32, #tpu.memory_space<vmem>>, %arg6: memref<4x128x128xf32, #tpu.memory_space<vmem>>) attributes {dimension_semantics = [#tpu.dimension_semantics<parallel>, #tpu.dimension_semantics<arbitrary>], iteration_bounds = array<i64: 2, 1>, scalar_prefetch = 0 : i64, scratch_operands = 0 : i64, tpu.core_type = #tpu.core_type<tc>, window_params = [{transform_indices = @transform_0, window_bounds = array<i64: 4, 128, 64>}, {transform_indices = @transform_1, window_bounds = array<i64: 4, 128, 64>}, {transform_indices = @transform_2, window_bounds = array<i64: 4, 128, 64>}, {transform_indices = @transform_3, window_bounds = array<i64: 4, 128, 64>}, {transform_indices = @transform_4, window_bounds = array<i64: 4, 128, 128>}]} {
    %c0 = arith.constant 0 : index
    %c0_0 = arith.constant 0 : index
    %c0_1 = arith.constant 0 : index
    %0 = vector.load %arg2[%c0, %c0_0, %c0_1] : memref<4x128x64xf32, #tpu.memory_space<vmem>>, vector<4x128x64xf32>
    %c0_2 = arith.constant 0 : index
    %c0_3 = arith.constant 0 : index
    %c0_4 = arith.constant 0 : index
    %1 = vector.load %arg3[%c0_2, %c0_3, %c0_4] : memref<4x128x64xf32, #tpu.memory_space<vmem>>, vector<4x128x64xf32>
    %c0_5 = arith.constant 0 : index
    %c0_6 = arith.constant 0 : index
    %c0_7 = arith.constant 0 : index
    %2 = vector.load %arg4[%c0_5, %c0_6, %c0_7] : memref<4x128x64xf32, #tpu.memory_space<vmem>>, vector<4x128x64xf32>
    %cst = arith.constant dense<0.000000e+00> : vector<4x128x128xf32>
    %3 = tpu.matmul %0, %1, %cst {dimension_numbers = #tpu.dot_dimension_numbers<[2], [2], [1], [1], [0, 0, 0, 1, 1, 1], [0], [0]>} : vector<4x128x64xf32>, vector<4x128x64xf32>, vector<4x128x128xf32> -> vector<4x128x128xf32>
    %cst_8 = arith.constant 1.250000e-01 : f32
    %4 = vector.broadcast %cst_8 : f32 to vector<4x128x128xf32>
    %5 = arith.mulf %3, %4 : vector<4x128x128xf32>
    %cst_9 = arith.constant dense<0xFF800000> : vector<4x128xf32>
    %6 = vector.multi_reduction <maximumf>, %5, %cst_9 [2] : vector<4x128x128xf32> to vector<4x128xf32>
    %7 = vector.shape_cast %6 : vector<4x128xf32> to vector<4x128x1xf32>
    %8 = vector.broadcast %7 : vector<4x128x1xf32> to vector<4x128x128xf32>
    %9 = arith.subf %5, %8 : vector<4x128x128xf32>
    %10 = math.exp %9 : vector<4x128x128xf32>
    %cst_10 = arith.constant dense<0.000000e+00> : vector<4x128xf32>
    %11 = vector.multi_reduction <add>, %10, %cst_10 [2] : vector<4x128x128xf32> to vector<4x128xf32>
    %12 = vector.shape_cast %11 : vector<4x128xf32> to vector<4x128x1xf32>
    %13 = tpu.reciprocal %12 : vector<4x128x1xf32> -> vector<4x128x1xf32>
    %14 = vector.broadcast %13 : vector<4x128x1xf32> to vector<4x128x128xf32>
    %15 = arith.mulf %10, %14 : vector<4x128x128xf32>
    %cst_11 = arith.constant dense<0.000000e+00> : vector<4x128x64xf32>
    %16 = tpu.matmul %15, %2, %cst_11 {dimension_numbers = #tpu.dot_dimension_numbers<[2], [1], [1], [2], [0, 0, 0, 1, 1, 2], [0], [0]>} : vector<4x128x128xf32>, vector<4x128x64xf32>, vector<4x128x64xf32> -> vector<4x128x64xf32>
    %c0_12 = arith.constant 0 : index
    %c0_13 = arith.constant 0 : index
    %c0_14 = arith.constant 0 : index
    %17 = vector.load %arg5[%c0_12, %c0_13, %c0_14] : memref<4x128x64xf32, #tpu.memory_space<vmem>>, vector<4x128x64xf32>
    tpu.vector_store %arg5[%c0_12, %c0_13, %c0_14], %16 {strides = array<i32>} : memref<4x128x64xf32, #tpu.memory_space<vmem>>, vector<4x128x64xf32>,
    %c0_15 = arith.constant 0 : index
    %c0_16 = arith.constant 0 : index
    %c0_17 = arith.constant 0 : index
    %18 = vector.load %arg6[%c0_15, %c0_16, %c0_17] : memref<4x128x128xf32, #tpu.memory_space<vmem>>, vector<4x128x128xf32>
    tpu.vector_store %arg6[%c0_15, %c0_16, %c0_17], %15 {strides = array<i32>} : memref<4x128x128xf32, #tpu.memory_space<vmem>>, vector<4x128x128xf32>,
    return
  }
  func.func @transform_0(%arg0: i32, %arg1: i32) -> (i32, i32, i32) {
    %c0_i32 = arith.constant 0 : i32
    %c0_i32_0 = arith.constant 0 : i32
    return %arg0, %arg1, %c0_i32 : i32, i32, i32
  }
  func.func @transform_1(%arg0: i32, %arg1: i32) -> (i32, i32, i32) {
    %c0_i32 = arith.constant 0 : i32
    %c0_i32_0 = arith.constant 0 : i32
    %c0_i32_1 = arith.constant 0 : i32
    return %arg0, %c0_i32, %c0_i32_0 : i32, i32, i32
  }
  func.func @transform_2(%arg0: i32, %arg1: i32) -> (i32, i32, i32) {
    %c0_i32 = arith.constant 0 : i32
    %c0_i32_0 = arith.constant 0 : i32
    %c0_i32_1 = arith.constant 0 : i32
    return %arg0, %c0_i32, %c0_i32_0 : i32, i32, i32
  }
  func.func @transform_3(%arg0: i32, %arg1: i32) -> (i32, i32, i32) {
    %c0_i32 = arith.constant 0 : i32
    %c0_i32_0 = arith.constant 0 : i32
    return %arg0, %arg1, %c0_i32 : i32, i32, i32
  }
  func.func @transform_4(%arg0: i32, %arg1: i32) -> (i32, i32, i32) {
    %c0_i32 = arith.constant 0 : i32
    %c0_i32_0 = arith.constant 0 : i32
    return %arg0, %arg1, %c0_i32 : i32, i32, i32
  }
}

</mosaic_0001>

<llo_original>
// kernel: tpu_custom_call.1
$region0: #{tpu_custom_call.1}
  #allocation0 [shape = 'u32[]', space=smem, size = 0x4, offset = 0x4, fixed_abs, tag = 'smem constant byte address 0x4 - core index']
  #allocation1 [shape = 'u32[144,128]{1,0:T(1,128)}', space=vmem, size = 0x12000, scoped, tag = 'internal scratch']
  %s0 = inlined_call_operand.vmem [shape: f32[8,128,64], index: 0, kind: input, shape index: {}]
  %s1 = inlined_call_operand.vmem [shape: f32[8,128,64], index: 1, kind: input, shape index: {}]
  %s2 = inlined_call_operand.vmem [shape: f32[8,128,64], index: 2, kind: input, shape index: {}]
  %s3 = inlined_call_operand.vmem [shape: f32[8,128,64], index: 3, kind: output, shape index: {0}]
  %s4 = inlined_call_operand.hbm [shape: f32[8,128,128], index: 4, kind: output, shape index: {1}]
  %5 = xla_tuple %s3, %s4
  %s6 = sld [smem:[#allocation0]]
  $region53: #{tpu_custom_call.1} parent=0
    _
  %s8 = ssub.s32 1, %s6
  %s9 = scalar_select 0, %s8, %s6
  $region1: #{tpu_custom_call.1} parent=0
    #allocation2 [shape = 'u8[524288]{0}', space=vmem, size = 0x80000, scoped, tag = 'output window, operand 1']
    #allocation3 [shape = 's32[2]{0}', space=sflag, size = 0x8, scoped, tag = 'scoped memory for tpu_custom_call.1']
    %10 = vsyncpa [#allocation3], 0
    %s11 = scalar_lea.sflag [#allocation3], 1
    %12 = vsyncpa %s11, 0
    loop: start=0, step=1, limit=4
    $region2: #{tpu_custom_call.1} parent=1 // loop_pre_header
      _
    $region3: #{tpu_custom_call.1} parent=1 // loop_header
      %s14 = sphi 0, %s18
      %p15 = scmp.ge.s32.totalorder %s14, 4
      %s21 = sphi 0, %s33
      %s22 = sphi 0, %s29
      %s23 = sphi 0, %s21
      %s24 = sphi 0, %s22
      %s25 = sphi 0, %s23
      %s26 = sphi 0, %s24
      %s38 = sphi 0, %s40
      %s41 = sphi 0, %s38
      %s42 = sphi 0, %s41
      %s58 = sphi 0, %s42
      %s64 = sphi 0, %s66
      %s67 = sphi 0, %s64
      %s68 = sphi 0, %s67
      %s84 = sphi 0, %s68
      %s90 = sphi 0, %s92
      %s93 = sphi 0, %s90
      %s94 = sphi 0, %s93
      %s110 = sphi 0, %s94
      %s118 = sphi 0, %s120
      %s121 = sphi 0, %s118
      %s122 = sphi 0, %s121
      %s138 = sphi 0, %s122
      %s146 = sphi 0, %s148
      %s149 = sphi 0, %s146
      %s150 = sphi 0, %s149
      %s166 = sphi 0, %s150
    $region4: #{tpu_custom_call.1} parent=1 // loop_header_branch
      %17 = sbr.rel (%p15) target = $region8
    $region5: #{tpu_custom_call.1} parent=1 // loop_body
      %s19 = ssub.s32 %s14, 1
      %s20 = ssub.s32 %s14, 2
      %s27 = sadd.s32 1, %s22
      %p28 = scmp.ge.s32.totalorder %s27, 1
      %s29 = scalar_select %p28, 0, %s27
      %s30 = sadd.s32 1, %s21
      %s31 = scalar_select %p28, %s30, %s21
      %p32 = scmp.ge.s32.totalorder %s31, 2
      %s33 = scalar_select %p32, 0, %s31
      %s34 = ssub.s32 %s21, %s33
      %s35 = ssub.s32 %s22, %s29
      %s36 = sor.u32 %s34, %s35
      %p37 = scmp.eq.s32.totalorder %s36, 0
      %s39 = sadd.s32 %s38, 1
      %s40 = scalar_select %p37, %s38, %s39
      %p43 = pneg %p37
      %p44 = scmp.eq.s32.totalorder %s14, 1
      %p45 = por %p43, %p44
      %p46 = scmp.ne.s32.totalorder %s38, %s41
      %p47 = scmp.eq.s32.totalorder %s14, 0
      %p48 = por %p46, %p47
      %p49 = scmp.ne.s32.totalorder %s38, %s41
      %p50 = scmp.eq.s32.totalorder %s19, 1
      %p51 = por %p49, %p50
      %p52 = scmp.ne.s32.totalorder %s41, %s42
      %p53 = scmp.eq.s32.totalorder %s19, 0
      %p54 = por %p52, %p53
      %p55 = scmp.ne.s32.totalorder %s41, %s42
      %p56 = scmp.eq.s32.totalorder %s20, 1
      %p57 = por %p55, %p56
      %p59 = scmp.ne.s32.totalorder %s42, %s58
      %p60 = scmp.eq.s32.totalorder %s20, 0
      %p61 = por %p59, %p60
      %s62 = ssub.s32 %s21, %s33
      %p63 = scmp.eq.s32.totalorder %s62, 0
      %s65 = sadd.s32 %s64, 1
      %s66 = scalar_select %p63, %s64, %s65
      %p69 = pneg %p63
      %p70 = scmp.eq.s32.totalorder %s14, 1
      %p71 = por %p69, %p70
      %p72 = scmp.ne.s32.totalorder %s64, %s67
      %p73 = scmp.eq.s32.totalorder %s14, 0
      %p74 = por %p72, %p73
      %p75 = scmp.ne.s32.totalorder %s64, %s67
      %p76 = scmp.eq.s32.totalorder %s19, 1
      %p77 = por %p75, %p76
      %p78 = scmp.ne.s32.totalorder %s67, %s68
      %p79 = scmp.eq.s32.totalorder %s19, 0
      %p80 = por %p78, %p79
      %p81 = scmp.ne.s32.totalorder %s67, %s68
      %p82 = scmp.eq.s32.totalorder %s20, 1
      %p83 = por %p81, %p82
      %p85 = scmp.ne.s32.totalorder %s68, %s84
      %p86 = scmp.eq.s32.totalorder %s20, 0
      %p87 = por %p85, %p86
      %s88 = ssub.s32 %s21, %s33
      %p89 = scmp.eq.s32.totalorder %s88, 0
      %s91 = sadd.s32 %s90, 1
      %s92 = scalar_select %p89, %s90, %s91
      %p95 = pneg %p89
      %p96 = scmp.eq.s32.totalorder %s14, 1
      %p97 = por %p95, %p96
      %p98 = scmp.ne.s32.totalorder %s90, %s93
      %p99 = scmp.eq.s32.totalorder %s14, 0
      %p100 = por %p98, %p99
      %p101 = scmp.ne.s32.totalorder %s90, %s93
      %p102 = scmp.eq.s32.totalorder %s19, 1
      %p103 = por %p101, %p102
      %p104 = scmp.ne.s32.totalorder %s93, %s94
      %p105 = scmp.eq.s32.totalorder %s19, 0
      %p106 = por %p104, %p105
      %p107 = scmp.ne.s32.totalorder %s93, %s94
      %p108 = scmp.eq.s32.totalorder %s20, 1
      %p109 = por %p107, %p108
      %p111 = scmp.ne.s32.totalorder %s94, %s110
      %p112 = scmp.eq.s32.totalorder %s20, 0
      %p113 = por %p111, %p112
      %s114 = ssub.s32 %s21, %s33
      %s115 = ssub.s32 %s22, %s29
      %s116 = sor.u32 %s114, %s115
      %p117 = scmp.eq.s32.totalorder %s116, 0
      %s119 = sadd.s32 %s118, 1
      %s120 = scalar_select %p117, %s118, %s119
      %p123 = pneg %p117
      %p124 = scmp.eq.s32.totalorder %s14, 1
      %p125 = por %p123, %p124
      %p126 = scmp.ne.s32.totalorder %s118, %s121
      %p127 = scmp.eq.s32.totalorder %s14, 0
      %p128 = por %p126, %p127
      %p129 = scmp.ne.s32.totalorder %s118, %s121
      %p130 = scmp.eq.s32.totalorder %s19, 1
      %p131 = por %p129, %p130
      %p132 = scmp.ne.s32.totalorder %s121, %s122
      %p133 = scmp.eq.s32.totalorder %s19, 0
      %p134 = por %p132, %p133
      %p135 = scmp.ne.s32.totalorder %s121, %s122
      %p136 = scmp.eq.s32.totalorder %s20, 1
      %p137 = por %p135, %p136
      %p139 = scmp.ne.s32.totalorder %s122, %s138
      %p140 = scmp.eq.s32.totalorder %s20, 0
      %p141 = por %p139, %p140
      %s142 = ssub.s32 %s21, %s33
      %s143 = ssub.s32 %s22, %s29
      %s144 = sor.u32 %s142, %s143
      %p145 = scmp.eq.s32.totalorder %s144, 0
      %s147 = sadd.s32 %s146, 1
      %s148 = scalar_select %p145, %s146, %s147
      %p151 = pneg %p145
      %p152 = scmp.eq.s32.totalorder %s14, 1
      %p153 = por %p151, %p152
      %p154 = scmp.ne.s32.totalorder %s146, %s149
      %p155 = scmp.eq.s32.totalorder %s14, 0
      %p156 = por %p154, %p155
      %p157 = scmp.ne.s32.totalorder %s146, %s149
      %p158 = scmp.eq.s32.totalorder %s19, 1
      %p159 = por %p157, %p158
      %p160 = scmp.ne.s32.totalorder %s149, %s150
      %p161 = scmp.eq.s32.totalorder %s19, 0
      %p162 = por %p160, %p161
      %p163 = scmp.ne.s32.totalorder %s149, %s150
      %p164 = scmp.eq.s32.totalorder %s20, 1
      %p165 = por %p163, %p164
      %p167 = scmp.ne.s32.totalorder %s150, %s166
      %p168 = scmp.eq.s32.totalorder %s20, 0
      %p169 = por %p167, %p168
      %p170 = scmp.le.s32.totalorder 1, %s14
      %p171 = scmp.lt.s32.totalorder %s14, 3
      %p172 = pnand %p170, %p171
      %p173 = pneg %p172
      // Predicated region
      $region9: #{tpu_custom_call.1} parent=5 // pred_check
        _
      $region10: #{tpu_custom_call.1} parent=5 // pred_check_branch
        %175 = sbr.rel (%p172) target = $region12
      $region11: #{tpu_custom_call.1} parent=5 // pred_region
        %s176 = ssub.s32 %s14, 1
      $region12: #{tpu_custom_call.1} parent=5 // pred_fallthru
        _
      %p177 = scmp.lt.s32.totalorder %s14, 2
      // Predicated region
      $region13: #{tpu_custom_call.1} parent=5 // pred_check
        %p178 = pneg %p177
      $region14: #{tpu_custom_call.1} parent=5 // pred_check_branch
        %180 = sbr.rel (%p178) target = $region16
      $region15: #{tpu_custom_call.1} parent=5 // pred_region
        // Predicated region
        $region17: #{tpu_custom_call.1} parent=15 // pred_check
          %p181 = pneg %p48
        $region18: #{tpu_custom_call.1} parent=15 // pred_check_branch
          %183 = sbr.rel (%p181) target = $region20
        $region19: #{tpu_custom_call.1} parent=15 // pred_region
          %s184 = smul.u32 4, %s21
          %s185 = smul.u32 16, %s22
          %p186 = scmp.lt.s32.totalorder %s184, 7
          %s187 = scalar_select %p186, %s184, 7
          %p188 = scmp.lt.s32.totalorder %s185, 15
          %s189 = scalar_select %p188, %s185, 15
          %s190 = smul.addr %s187, 16
          %s191 = sadd.s32 %s189, %s190
          %s192 = smul.addr %s191, 8
          %s193 = scalar_lea.vmem %s0, %s192
          %s194 = smul.u32 4, %s21
          %s195 = smul.u32 16, %s22
        $region20: #{tpu_custom_call.1} parent=15 // pred_fallthru
          _
        // Predicated region
        $region21: #{tpu_custom_call.1} parent=15 // pred_check
          %p196 = pneg %p74
        $region22: #{tpu_custom_call.1} parent=15 // pred_check_branch
          %198 = sbr.rel (%p196) target = $region24
        $region23: #{tpu_custom_call.1} parent=15 // pred_region
          %s199 = smul.u32 4, %s21
          %p200 = scmp.lt.s32.totalorder %s199, 7
          %s201 = scalar_select %p200, %s199, 7
          %s202 = smul.addr %s201, 16
          %s203 = smul.addr %s202, 8
          %s204 = scalar_lea.vmem %s1, %s203
          %s205 = smul.u32 4, %s21
        $region24: #{tpu_custom_call.1} parent=15 // pred_fallthru
          _
        // Predicated region
        $region25: #{tpu_custom_call.1} parent=15 // pred_check
          %p206 = pneg %p100
        $region26: #{tpu_custom_call.1} parent=15 // pred_check_branch
          %208 = sbr.rel (%p206) target = $region28
        $region27: #{tpu_custom_call.1} parent=15 // pred_region
          %s209 = smul.u32 4, %s21
          %p210 = scmp.lt.s32.totalorder %s209, 7
          %s211 = scalar_select %p210, %s209, 7
          %s212 = smul.addr %s211, 16
          %s213 = smul.addr %s212, 8
          %s214 = scalar_lea.vmem %s2, %s213
          %s215 = smul.u32 4, %s21
        $region28: #{tpu_custom_call.1} parent=15 // pred_fallthru
          _
      $region16: #{tpu_custom_call.1} parent=5 // pred_fallthru
        _
      %p216 = scmp.le.s32.totalorder 1, %s14
      %p217 = scmp.lt.s32.totalorder %s14, 3
      %p218 = pnand %p216, %p217
      %p219 = pneg %p218
      // Predicated region
      $region29: #{tpu_custom_call.1} parent=5 // pred_check
        _
      $region30: #{tpu_custom_call.1} parent=5 // pred_check_branch
        %221 = sbr.rel (%p218) target = $region32
      $region31: #{tpu_custom_call.1} parent=5 // pred_region
        %s222 = ssub.s32 %s14, 1
        %s223 = smul.u32 4, %s23
        %s224 = smul.u32 16, %s24
        %p225 = scmp.lt.s32.totalorder %s223, 7
        %s226 = scalar_select %p225, %s223, 7
        %p227 = scmp.lt.s32.totalorder %s224, 15
        %s228 = scalar_select %p227, %s224, 15
        %s229 = smul.addr %s226, 16
        %s230 = sadd.s32 %s228, %s229
        %s231 = smul.addr %s230, 8
        %s232 = scalar_lea.vmem %s0, %s231
        %p233 = pneg %p54
        %p234 = pneg %p51
        %s235 = smul.u32 4, %s23
        %p236 = scmp.lt.s32.totalorder %s235, 7
        %s237 = scalar_select %p236, %s235, 7
        %s238 = smul.addr %s237, 16
        %s239 = smul.addr %s238, 8
        %s240 = scalar_lea.vmem %s1, %s239
        %p241 = pneg %p80
        %p242 = pneg %p77
        %s243 = smul.u32 4, %s23
        %p244 = scmp.lt.s32.totalorder %s243, 7
        %s245 = scalar_select %p244, %s243, 7
        %s246 = smul.addr %s245, 16
        %s247 = smul.addr %s246, 8
        %s248 = scalar_lea.vmem %s2, %s247
        %p249 = pneg %p106
        %p250 = pneg %p103
        %p251 = pneg %p134
        %p252 = pneg %p131
        %s253 = smul.u32 4, %s23
        %s254 = smul.u32 16, %s24
        %p255 = scmp.lt.s32.totalorder %s253, 7
        %s256 = scalar_select %p255, %s253, 7
        %p257 = scmp.lt.s32.totalorder %s254, 15
        %s258 = scalar_select %p257, %s254, 15
        %s259 = smul.addr %s256, 16
        %s260 = sadd.s32 %s258, %s259
        %s261 = smul.addr %s260, 8
        %s262 = scalar_lea.vmem %s3, %s261
        %p263 = pneg %p162
        %p264 = pneg %p159
        %s265 = sand.u32 %s149, 1
        %s266 = scalar_lea.sflag [#allocation3], %s265
        %s267 = sand.u32 %s149, 1
        %s268 = smul.addr %s267, 512
        %s269 = scalar_lea.vmem [#allocation2], %s268
        %s270 = smul.u32 4, %s23
        %s271 = smul.u32 16, %s24
        %p272 = scmp.lt.s32.totalorder %s270, 7
        %s273 = scalar_select %p272, %s270, 7
        %p274 = scmp.lt.s32.totalorder %s271, 15
        %s275 = scalar_select %p274, %s271, 15
        %s276 = smul.addr %s273, 16
        %s277 = sadd.s32 %s275, %s276
        %s278 = smul.addr %s277, 8
        %s279 = scalar_lea.vmem %s0, %s278
        %s280 = smul.u32 4, %s23
        %s281 = smul.u32 16, %s24
        %s282 = smul.u32 4, %s23
        %p283 = scmp.lt.s32.totalorder %s282, 7
        %s284 = scalar_select %p283, %s282, 7
        %s285 = smul.addr %s284, 16
        %s286 = smul.addr %s285, 8
        %s287 = scalar_lea.vmem %s1, %s286
        %s288 = smul.u32 4, %s23
        %s289 = smul.u32 4, %s23
        %p290 = scmp.lt.s32.totalorder %s289, 7
        %s291 = scalar_select %p290, %s289, 7
        %s292 = smul.addr %s291, 16
        %s293 = smul.addr %s292, 8
        %s294 = scalar_lea.vmem %s2, %s293
        %s295 = smul.u32 4, %s23
        %s296 = smul.u32 4, %s23
        %s297 = smul.u32 16, %s24
        %p298 = scmp.lt.s32.totalorder %s296, 7
        %s299 = scalar_select %p298, %s296, 7
        %p300 = scmp.lt.s32.totalorder %s297, 15
        %s301 = scalar_select %p300, %s297, 15
        %s302 = smul.addr %s299, 16
        %s303 = sadd.s32 %s301, %s302
        %s304 = smul.addr %s303, 8
        %s305 = scalar_lea.vmem %s3, %s304
        %s306 = smul.u32 4, %s23
        %s307 = smul.u32 16, %s24
        %s308 = smul.u32 4, %s23
        %s309 = smul.u32 16, %s24
        %v310 = vld [vmem:[%s279] sm:$0xff]
        %v311 = vld [vmem:[%s279 + $0x8] sm:$0xff]
        %v312 = vld [vmem:[%s279 + $0x10] sm:$0xff]
        %v313 = vld [vmem:[%s279 + $0x18] sm:$0xff]
        %v314 = vld [vmem:[%s279 + $0x20] sm:$0xff]
        %v315 = vld [vmem:[%s279 + $0x28] sm:$0xff]
        %v316 = vld [vmem:[%s279 + $0x30] sm:$0xff]
        %v317 = vld [vmem:[%s279 + $0x38] sm:$0xff]
        %v318 = vld [vmem:[%s279 + $0x40] sm:$0xff]
        %v319 = vld [vmem:[%s279 + $0x48] sm:$0xff]
        %v320 = vld [vmem:[%s279 + $0x50] sm:$0xff]
        %v321 = vld [vmem:[%s279 + $0x58] sm:$0xff]
        %v322 = vld [vmem:[%s279 + $0x60] sm:$0xff]
        %v323 = vld [vmem:[%s279 + $0x68] sm:$0xff]
        %v324 = vld [vmem:[%s279 + $0x70] sm:$0xff]
        %v325 = vld [vmem:[%s279 + $0x78] sm:$0xff]
        %v326 = vld [vmem:[%s279 + $0x80] sm:$0xff]
        %v327 = vld [vmem:[%s279 + $0x88] sm:$0xff]
        %v328 = vld [vmem:[%s279 + $0x90] sm:$0xff]
        %v329 = vld [vmem:[%s279 + $0x98] sm:$0xff]
        %v330 = vld [vmem:[%s279 + $0xa0] sm:$0xff]
        %v331 = vld [vmem:[%s279 + $0xa8] sm:$0xff]
        %v332 = vld [vmem:[%s279 + $0xb0] sm:$0xff]
        %v333 = vld [vmem:[%s279 + $0xb8] sm:$0xff]
        %v334 = vld [vmem:[%s279 + $0xc0] sm:$0xff]
        %v335 = vld [vmem:[%s279 + $0xc8] sm:$0xff]
        %v336 = vld [vmem:[%s279 + $0xd0] sm:$0xff]
        %v337 = vld [vmem:[%s279 + $0xd8] sm:$0xff]
        %v338 = vld [vmem:[%s279 + $0xe0] sm:$0xff]
        %v339 = vld [vmem:[%s279 + $0xe8] sm:$0xff]
        %v340 = vld [vmem:[%s279 + $0xf0] sm:$0xff]
        %v341 = vld [vmem:[%s279 + $0xf8] sm:$0xff]
        %v342 = vld [vmem:[%s279 + $0x100] sm:$0xff]
        %v343 = vld [vmem:[%s279 + $0x108] sm:$0xff]
        %v344 = vld [vmem:[%s279 + $0x110] sm:$0xff]
        %v345 = vld [vmem:[%s279 + $0x118] sm:$0xff]
        %v346 = vld [vmem:[%s279 + $0x120] sm:$0xff]
        %v347 = vld [vmem:[%s279 + $0x128] sm:$0xff]
        %v348 = vld [vmem:[%s279 + $0x130] sm:$0xff]
        %v349 = vld [vmem:[%s279 + $0x138] sm:$0xff]
        %v350 = vld [vmem:[%s279 + $0x140] sm:$0xff]
        %v351 = vld [vmem:[%s279 + $0x148] sm:$0xff]
        %v352 = vld [vmem:[%s279 + $0x150] sm:$0xff]
        %v353 = vld [vmem:[%s279 + $0x158] sm:$0xff]
        %v354 = vld [vmem:[%s279 + $0x160] sm:$0xff]
        %v355 = vld [vmem:[%s279 + $0x168] sm:$0xff]
        %v356 = vld [vmem:[%s279 + $0x170] sm:$0xff]
        %v357 = vld [vmem:[%s279 + $0x178] sm:$0xff]
        %v358 = vld [vmem:[%s279 + $0x180] sm:$0xff]
        %v359 = vld [vmem:[%s279 + $0x188] sm:$0xff]
        %v360 = vld [vmem:[%s279 + $0x190] sm:$0xff]
        %v361 = vld [vmem:[%s279 + $0x198] sm:$0xff]
        %v362 = vld [vmem:[%s279 + $0x1a0] sm:$0xff]
        %v363 = vld [vmem:[%s279 + $0x1a8] sm:$0xff]
        %v364 = vld [vmem:[%s279 + $0x1b0] sm:$0xff]
        %v365 = vld [vmem:[%s279 + $0x1b8] sm:$0xff]
        %v366 = vld [vmem:[%s279 + $0x1c0] sm:$0xff]
        %v367 = vld [vmem:[%s279 + $0x1c8] sm:$0xff]
        %v368 = vld [vmem:[%s279 + $0x1d0] sm:$0xff]
        %v369 = vld [vmem:[%s279 + $0x1d8] sm:$0xff]
        %v370 = vld [vmem:[%s279 + $0x1e0] sm:$0xff]
        %v371 = vld [vmem:[%s279 + $0x1e8] sm:$0xff]
        %v372 = vld [vmem:[%s279 + $0x1f0] sm:$0xff]
        %v373 = vld [vmem:[%s279 + $0x1f8] sm:$0xff]
        %v374 = vld [vmem:[%s287] sm:$0xff]
        %v375 = vld [vmem:[%s287 + $0x8] sm:$0xff]
        %v376 = vld [vmem:[%s287 + $0x10] sm:$0xff]
        %v377 = vld [vmem:[%s287 + $0x18] sm:$0xff]
        %v378 = vld [vmem:[%s287 + $0x20] sm:$0xff]
        %v379 = vld [vmem:[%s287 + $0x28] sm:$0xff]
        %v380 = vld [vmem:[%s287 + $0x30] sm:$0xff]
        %v381 = vld [vmem:[%s287 + $0x38] sm:$0xff]
        %v382 = vld [vmem:[%s287 + $0x40] sm:$0xff]
        %v383 = vld [vmem:[%s287 + $0x48] sm:$0xff]
        %v384 = vld [vmem:[%s287 + $0x50] sm:$0xff]
        %v385 = vld [vmem:[%s287 + $0x58] sm:$0xff]
        %v386 = vld [vmem:[%s287 + $0x60] sm:$0xff]
        %v387 = vld [vmem:[%s287 + $0x68] sm:$0xff]
        %v388 = vld [vmem:[%s287 + $0x70] sm:$0xff]
        %v389 = vld [vmem:[%s287 + $0x78] sm:$0xff]
        %v390 = vld [vmem:[%s287 + $0x80] sm:$0xff]
        %v391 = vld [vmem:[%s287 + $0x88] sm:$0xff]
        %v392 = vld [vmem:[%s287 + $0x90] sm:$0xff]
        %v393 = vld [vmem:[%s287 + $0x98] sm:$0xff]
        %v394 = vld [vmem:[%s287 + $0xa0] sm:$0xff]
        %v395 = vld [vmem:[%s287 + $0xa8] sm:$0xff]
        %v396 = vld [vmem:[%s287 + $0xb0] sm:$0xff]
        %v397 = vld [vmem:[%s287 + $0xb8] sm:$0xff]
        %v398 = vld [vmem:[%s287 + $0xc0] sm:$0xff]
        %v399 = vld [vmem:[%s287 + $0xc8] sm:$0xff]
        %v400 = vld [vmem:[%s287 + $0xd0] sm:$0xff]
        %v401 = vld [vmem:[%s287 + $0xd8] sm:$0xff]
        %v402 = vld [vmem:[%s287 + $0xe0] sm:$0xff]
        %v403 = vld [vmem:[%s287 + $0xe8] sm:$0xff]
        %v404 = vld [vmem:[%s287 + $0xf0] sm:$0xff]
        %v405 = vld [vmem:[%s287 + $0xf8] sm:$0xff]
        %v406 = vld [vmem:[%s287 + $0x100] sm:$0xff]
        %v407 = vld [vmem:[%s287 + $0x108] sm:$0xff]
        %v408 = vld [vmem:[%s287 + $0x110] sm:$0xff]
        %v409 = vld [vmem:[%s287 + $0x118] sm:$0xff]
        %v410 = vld [vmem:[%s287 + $0x120] sm:$0xff]
        %v411 = vld [vmem:[%s287 + $0x128] sm:$0xff]
        %v412 = vld [vmem:[%s287 + $0x130] sm:$0xff]
        %v413 = vld [vmem:[%s287 + $0x138] sm:$0xff]
        %v414 = vld [vmem:[%s287 + $0x140] sm:$0xff]
        %v415 = vld [vmem:[%s287 + $0x148] sm:$0xff]
        %v416 = vld [vmem:[%s287 + $0x150] sm:$0xff]
        %v417 = vld [vmem:[%s287 + $0x158] sm:$0xff]
        %v418 = vld [vmem:[%s287 + $0x160] sm:$0xff]
        %v419 = vld [vmem:[%s287 + $0x168] sm:$0xff]
        %v420 = vld [vmem:[%s287 + $0x170] sm:$0xff]
        %v421 = vld [vmem:[%s287 + $0x178] sm:$0xff]
        %v422 = vld [vmem:[%s287 + $0x180] sm:$0xff]
        %v423 = vld [vmem:[%s287 + $0x188] sm:$0xff]
        %v424 = vld [vmem:[%s287 + $0x190] sm:$0xff]
        %v425 = vld [vmem:[%s287 + $0x198] sm:$0xff]
        %v426 = vld [vmem:[%s287 + $0x1a0] sm:$0xff]
        %v427 = vld [vmem:[%s287 + $0x1a8] sm:$0xff]
        %v428 = vld [vmem:[%s287 + $0x1b0] sm:$0xff]
        %v429 = vld [vmem:[%s287 + $0x1b8] sm:$0xff]
        %v430 = vld [vmem:[%s287 + $0x1c0] sm:$0xff]
        %v431 = vld [vmem:[%s287 + $0x1c8] sm:$0xff]
        %v432 = vld [vmem:[%s287 + $0x1d0] sm:$0xff]
        %v433 = vld [vmem:[%s287 + $0x1d8] sm:$0xff]
        %v434 = vld [vmem:[%s287 + $0x1e0] sm:$0xff]
        %v435 = vld [vmem:[%s287 + $0x1e8] sm:$0xff]
        %v436 = vld [vmem:[%s287 + $0x1f0] sm:$0xff]
        %v437 = vld [vmem:[%s287 + $0x1f8] sm:$0xff]
        %v438 = vld [vmem:[%s294] sm:$0xff]
        %v439 = vld [vmem:[%s294 + $0x8] sm:$0xff]
        %v440 = vld [vmem:[%s294 + $0x10] sm:$0xff]
        %v441 = vld [vmem:[%s294 + $0x18] sm:$0xff]
        %v442 = vld [vmem:[%s294 + $0x20] sm:$0xff]
        %v443 = vld [vmem:[%s294 + $0x28] sm:$0xff]
        %v444 = vld [vmem:[%s294 + $0x30] sm:$0xff]
        %v445 = vld [vmem:[%s294 + $0x38] sm:$0xff]
        %v446 = vld [vmem:[%s294 + $0x40] sm:$0xff]
        %v447 = vld [vmem:[%s294 + $0x48] sm:$0xff]
        %v448 = vld [vmem:[%s294 + $0x50] sm:$0xff]
        %v449 = vld [vmem:[%s294 + $0x58] sm:$0xff]
        %v450 = vld [vmem:[%s294 + $0x60] sm:$0xff]
        %v451 = vld [vmem:[%s294 + $0x68] sm:$0xff]
        %v452 = vld [vmem:[%s294 + $0x70] sm:$0xff]
        %v453 = vld [vmem:[%s294 + $0x78] sm:$0xff]
        %v454 = vld [vmem:[%s294 + $0x80] sm:$0xff]
        %v455 = vld [vmem:[%s294 + $0x88] sm:$0xff]
        %v456 = vld [vmem:[%s294 + $0x90] sm:$0xff]
        %v457 = vld [vmem:[%s294 + $0x98] sm:$0xff]
        %v458 = vld [vmem:[%s294 + $0xa0] sm:$0xff]
        %v459 = vld [vmem:[%s294 + $0xa8] sm:$0xff]
        %v460 = vld [vmem:[%s294 + $0xb0] sm:$0xff]
        %v461 = vld [vmem:[%s294 + $0xb8] sm:$0xff]
        %v462 = vld [vmem:[%s294 + $0xc0] sm:$0xff]
        %v463 = vld [vmem:[%s294 + $0xc8] sm:$0xff]
        %v464 = vld [vmem:[%s294 + $0xd0] sm:$0xff]
        %v465 = vld [vmem:[%s294 + $0xd8] sm:$0xff]
        %v466 = vld [vmem:[%s294 + $0xe0] sm:$0xff]
        %v467 = vld [vmem:[%s294 + $0xe8] sm:$0xff]
        %v468 = vld [vmem:[%s294 + $0xf0] sm:$0xff]
        %v469 = vld [vmem:[%s294 + $0xf8] sm:$0xff]
        %v470 = vld [vmem:[%s294 + $0x100] sm:$0xff]
        %v471 = vld [vmem:[%s294 + $0x108] sm:$0xff]
        %v472 = vld [vmem:[%s294 + $0x110] sm:$0xff]
        %v473 = vld [vmem:[%s294 + $0x118] sm:$0xff]
        %v474 = vld [vmem:[%s294 + $0x120] sm:$0xff]
        %v475 = vld [vmem:[%s294 + $0x128] sm:$0xff]
        %v476 = vld [vmem:[%s294 + $0x130] sm:$0xff]
        %v477 = vld [vmem:[%s294 + $0x138] sm:$0xff]
        %v478 = vld [vmem:[%s294 + $0x140] sm:$0xff]
        %v479 = vld [vmem:[%s294 + $0x148] sm:$0xff]
        %v480 = vld [vmem:[%s294 + $0x150] sm:$0xff]
        %v481 = vld [vmem:[%s294 + $0x158] sm:$0xff]
        %v482 = vld [vmem:[%s294 + $0x160] sm:$0xff]
        %v483 = vld [vmem:[%s294 + $0x168] sm:$0xff]
        %v484 = vld [vmem:[%s294 + $0x170] sm:$0xff]
        %v485 = vld [vmem:[%s294 + $0x178] sm:$0xff]
        %v486 = vld [vmem:[%s294 + $0x180] sm:$0xff]
        %v487 = vld [vmem:[%s294 + $0x188] sm:$0xff]
        %v488 = vld [vmem:[%s294 + $0x190] sm:$0xff]
        %v489 = vld [vmem:[%s294 + $0x198] sm:$0xff]
        %v490 = vld [vmem:[%s294 + $0x1a0] sm:$0xff]
        %v491 = vld [vmem:[%s294 + $0x1a8] sm:$0xff]
        %v492 = vld [vmem:[%s294 + $0x1b0] sm:$0xff]
        %v493 = vld [vmem:[%s294 + $0x1b8] sm:$0xff]
        %v494 = vld [vmem:[%s294 + $0x1c0] sm:$0xff]
        %v495 = vld [vmem:[%s294 + $0x1c8] sm:$0xff]
        %v496 = vld [vmem:[%s294 + $0x1d0] sm:$0xff]
        %v497 = vld [vmem:[%s294 + $0x1d8] sm:$0xff]
        %v498 = vld [vmem:[%s294 + $0x1e0] sm:$0xff]
        %v499 = vld [vmem:[%s294 + $0x1e8] sm:$0xff]
        %v500 = vld [vmem:[%s294 + $0x1f0] sm:$0xff]
        %v501 = vld [vmem:[%s294 + $0x1f8] sm:$0xff]
        %vm502 = vcmask 523264
        %v504 = vsel %vm502, %v310, 0
        %v507 = vsel %vm502, %v311, 0
        %v510 = vsel %vm502, %v312, 0
        %v513 = vsel %vm502, %v313, 0
        %v516 = vsel %vm502, %v314, 0
        %v519 = vsel %vm502, %v315, 0
        %v522 = vsel %vm502, %v316, 0
        %v525 = vsel %vm502, %v317, 0
        %v528 = vsel %vm502, %v318, 0
        %v531 = vsel %vm502, %v319, 0
        %v534 = vsel %vm502, %v320, 0
        %v537 = vsel %vm502, %v321, 0
        %v540 = vsel %vm502, %v322, 0
        %v543 = vsel %vm502, %v323, 0
        %v546 = vsel %vm502, %v324, 0
        %v549 = vsel %vm502, %v325, 0
        %v552 = vsel %vm502, %v374, 0
        %v555 = vsel %vm502, %v375, 0
        %v558 = vsel %vm502, %v376, 0
        %v561 = vsel %vm502, %v377, 0
        %v564 = vsel %vm502, %v378, 0
        %v567 = vsel %vm502, %v379, 0
        %v570 = vsel %vm502, %v380, 0
        %v573 = vsel %vm502, %v381, 0
        %v576 = vsel %vm502, %v382, 0
        %v579 = vsel %vm502, %v383, 0
        %v582 = vsel %vm502, %v384, 0
        %v585 = vsel %vm502, %v385, 0
        %v588 = vsel %vm502, %v386, 0
        %v591 = vsel %vm502, %v387, 0
        %v594 = vsel %vm502, %v388, 0
        %v597 = vsel %vm502, %v389, 0
        %599 = vmatprep.subr.mxu0 0.0
        %600 = vmatpush1.xpose.msra.mxu0 %v552
        %601 = vmatprep.subr.mxu0 0.0
        %602 = vmatpush1.xpose.msra.mxu0 %v555
        %603 = vmatprep.subr.mxu0 0.0
        %604 = vmatpush1.xpose.msra.mxu0 %v558
        %605 = vmatprep.subr.mxu0 0.0
        %606 = vmatpush1.xpose.msra.mxu0 %v561
        %607 = vmatprep.subr.mxu0 0.0
        %608 = vmatpush1.xpose.msra.mxu0 %v564
        %609 = vmatprep.subr.mxu0 0.0
        %610 = vmatpush1.xpose.msra.mxu0 %v567
        %611 = vmatprep.subr.mxu0 0.0
        %612 = vmatpush1.xpose.msra.mxu0 %v570
        %613 = vmatprep.subr.mxu0 0.0
        %614 = vmatpush1.xpose.msra.mxu0 %v573
        %615 = vmatprep.subr.mxu0 0.0
        %616 = vmatpush1.xpose.msra.mxu0 %v576
        %617 = vmatprep.subr.mxu0 0.0
        %618 = vmatpush1.xpose.msra.mxu0 %v579
        %619 = vmatprep.subr.mxu0 0.0
        %620 = vmatpush1.xpose.msra.mxu0 %v582
        %621 = vmatprep.subr.mxu0 0.0
        %622 = vmatpush1.xpose.msra.mxu0 %v585
        %623 = vmatprep.subr.mxu0 0.0
        %624 = vmatpush1.xpose.msra.mxu0 %v588
        %625 = vmatprep.subr.mxu0 0.0
        %626 = vmatpush1.xpose.msra.mxu0 %v591
        %627 = vmatprep.subr.mxu0 0.0
        %628 = vmatpush1.xpose.msra.mxu0 %v594
        %629 = vmatprep.subr.mxu0 0.0
        %630 = vmatpush1.xpose.msra.mxu0 %v597
        %631 = vmatprep.subr.mxu0 0.0
        %632 = vmatpush1.xpose.msra.mxu0 0.0
        %633 = vmatprep.subr.mxu0 0.0
        %634 = vmatpush1.xpose.msra.mxu0 0.0
        %635 = vmatprep.subr.mxu0 0.0
        %636 = vmatpush1.xpose.msra.mxu0 0.0
        %637 = vmatprep.subr.mxu0 0.0
        %638 = vmatpush1.xpose.msra.mxu0 0.0
        %639 = vmatprep.subr.mxu0 0.0
        %640 = vmatpush1.xpose.msra.mxu0 0.0
        %641 = vmatprep.subr.mxu0 0.0
        %642 = vmatpush1.xpose.msra.mxu0 0.0
        %643 = vmatprep.subr.mxu0 0.0
        %644 = vmatpush1.xpose.msra.mxu0 0.0
        %645 = vmatprep.subr.mxu0 0.0
        %646 = vmatpush1.xpose.msra.mxu0 0.0
        %647 = vmatprep.subr.mxu0 0.0
        %648 = vmatpush1.xpose.msra.mxu0 0.0
        %649 = vmatprep.subr.mxu0 0.0
        %650 = vmatpush1.xpose.msra.mxu0 0.0
        %651 = vmatprep.subr.mxu0 0.0
        %652 = vmatpush1.xpose.msra.mxu0 0.0
        %653 = vmatprep.subr.mxu0 0.0
        %654 = vmatpush1.xpose.msra.mxu0 0.0
        %655 = vmatprep.subr.mxu0 0.0
        %656 = vmatpush1.xpose.msra.mxu0 0.0
        %657 = vmatprep.subr.mxu0 0.0
        %658 = vmatpush1.xpose.msra.mxu0 0.0
        %659 = vmatprep.subr.mxu0 0.0
        %660 = vmatpush1.xpose.msra.mxu0 0.0
        %661 = vmatprep.subr.mxu0 0.0
        %662 = vmatpush1.xpose.msra.mxu0 0.0
        %663 = vmatprep.mubr.f32.mxu0 0.0
        %664 = vmatmul.mubr.f32.gmra.mrb[0].mxu0 %v504
        %v665 = vpop.f32.mrb[0].mxu0
        %v666 = vadd.f32 0.0, %v665
        %v667 = vpop.f32.mrb[0].mxu0
        %668 = vmatprep.mubr.f32.mxu0 0.0
        %669 = vmatmul.mubr.f32.gmra.mrb[0].mxu0 %v507
        %v670 = vpop.f32.mrb[0].mxu0
        %v671 = vadd.f32 0.0, %v670
        %v672 = vpop.f32.mrb[0].mxu0
        %673 = vmatprep.mubr.f32.mxu0 0.0
        %674 = vmatmul.mubr.f32.gmra.mrb[0].mxu0 %v510
        %v675 = vpop.f32.mrb[0].mxu0
        %v676 = vadd.f32 0.0, %v675
        %v677 = vpop.f32.mrb[0].mxu0
        %678 = vmatprep.mubr.f32.mxu0 0.0
        %679 = vmatmul.mubr.f32.gmra.mrb[0].mxu0 %v513
        %v680 = vpop.f32.mrb[0].mxu0
        %v681 = vadd.f32 0.0, %v680
        %v682 = vpop.f32.mrb[0].mxu0
        %683 = vmatprep.mubr.f32.mxu0 0.0
        %684 = vmatmul.mubr.f32.gmra.mrb[0].mxu0 %v516
        %v685 = vpop.f32.mrb[0].mxu0
        %v686 = vadd.f32 0.0, %v685
        %v687 = vpop.f32.mrb[0].mxu0
        %688 = vmatprep.mubr.f32.mxu0 0.0
        %689 = vmatmul.mubr.f32.gmra.mrb[0].mxu0 %v519
        %v690 = vpop.f32.mrb[0].mxu0
        %v691 = vadd.f32 0.0, %v690
        %v692 = vpop.f32.mrb[0].mxu0
        %693 = vmatprep.mubr.f32.mxu0 0.0
        %694 = vmatmul.mubr.f32.gmra.mrb[0].mxu0 %v522
        %v695 = vpop.f32.mrb[0].mxu0
        %v696 = vadd.f32 0.0, %v695
        %v697 = vpop.f32.mrb[0].mxu0
        %698 = vmatprep.mubr.f32.mxu0 0.0
        %699 = vmatmul.mubr.f32.gmra.mrb[0].mxu0 %v525
        %v700 = vpop.f32.mrb[0].mxu0
        %v701 = vadd.f32 0.0, %v700
        %v702 = vpop.f32.mrb[0].mxu0
        %703 = vmatprep.mubr.f32.mxu0 0.0
        %704 = vmatmul.mubr.f32.gmra.mrb[0].mxu0 %v528
        %v705 = vpop.f32.mrb[0].mxu0
        %v706 = vadd.f32 0.0, %v705
        %v707 = vpop.f32.mrb[0].mxu0
        %708 = vmatprep.mubr.f32.mxu0 0.0
        %709 = vmatmul.mubr.f32.gmra.mrb[0].mxu0 %v531
        %v710 = vpop.f32.mrb[0].mxu0
        %v711 = vadd.f32 0.0, %v710
        %v712 = vpop.f32.mrb[0].mxu0
        %713 = vmatprep.mubr.f32.mxu0 0.0
        %714 = vmatmul.mubr.f32.gmra.mrb[0].mxu0 %v534
        %v715 = vpop.f32.mrb[0].mxu0
        %v716 = vadd.f32 0.0, %v715
        %v717 = vpop.f32.mrb[0].mxu0
        %718 = vmatprep.mubr.f32.mxu0 0.0
        %719 = vmatmul.mubr.f32.gmra.mrb[0].mxu0 %v537
        %v720 = vpop.f32.mrb[0].mxu0
        %v721 = vadd.f32 0.0, %v720
        %v722 = vpop.f32.mrb[0].mxu0
        %723 = vmatprep.mubr.f32.mxu0 0.0
        %724 = vmatmul.mubr.f32.gmra.mrb[0].mxu0 %v540
        %v725 = vpop.f32.mrb[0].mxu0
        %v726 = vadd.f32 0.0, %v725
        %v727 = vpop.f32.mrb[0].mxu0
        %728 = vmatprep.mubr.f32.mxu0 0.0
        %729 = vmatmul.mubr.f32.gmra.mrb[0].mxu0 %v543
        %v730 = vpop.f32.mrb[0].mxu0
        %v731 = vadd.f32 0.0, %v730
        %v732 = vpop.f32.mrb[0].mxu0
        %733 = vmatprep.mubr.f32.mxu0 0.0
        %734 = vmatmul.mubr.f32.gmra.mrb[0].mxu0 %v546
        %v735 = vpop.f32.mrb[0].mxu0
        %v736 = vadd.f32 0.0, %v735
        %v737 = vpop.f32.mrb[0].mxu0
        %738 = vmatprep.mubr.f32.mxu0 0.0
        %739 = vmatmul.mubr.f32.gmra.mrb[0].mxu0 %v549
        %v740 = vpop.f32.mrb[0].mxu0
        %v741 = vadd.f32 0.0, %v740
        %v742 = vpop.f32.mrb[0].mxu0
        %743 = vdwg.mxu0
        %v745 = vsel %vm502, %v326, 0
        %v748 = vsel %vm502, %v327, 0
        %v751 = vsel %vm502, %v328, 0
        %v754 = vsel %vm502, %v329, 0
        %v757 = vsel %vm502, %v330, 0
        %v760 = vsel %vm502, %v331, 0
        %v763 = vsel %vm502, %v332, 0
        %v766 = vsel %vm502, %v333, 0
        %v769 = vsel %vm502, %v334, 0
        %v772 = vsel %vm502, %v335, 0
        %v775 = vsel %vm502, %v336, 0
        %v778 = vsel %vm502, %v337, 0
        %v781 = vsel %vm502, %v338, 0
        %v784 = vsel %vm502, %v339, 0
        %v787 = vsel %vm502, %v340, 0
        %v790 = vsel %vm502, %v341, 0
        %v793 = vsel %vm502, %v390, 0
        %v796 = vsel %vm502, %v391, 0
        %v799 = vsel %vm502, %v392, 0
        %v802 = vsel %vm502, %v393, 0
        %v805 = vsel %vm502, %v394, 0
        %v808 = vsel %vm502, %v395, 0
        %v811 = vsel %vm502, %v396, 0
        %v814 = vsel %vm502, %v397, 0
        %v817 = vsel %vm502, %v398, 0
        %v820 = vsel %vm502, %v399, 0
        %v823 = vsel %vm502, %v400, 0
        %v826 = vsel %vm502, %v401, 0
        %v829 = vsel %vm502, %v402, 0
        %v832 = vsel %vm502, %v403, 0
        %v835 = vsel %vm502, %v404, 0
        %v838 = vsel %vm502, %v405, 0
        %840 = vmatprep.subr.mxu0 0.0
        %841 = vmatpush1.xpose.msra.mxu0 %v793
        %842 = vmatprep.subr.mxu0 0.0
        %843 = vmatpush1.xpose.msra.mxu0 %v796
        %844 = vmatprep.subr.mxu0 0.0
        %845 = vmatpush1.xpose.msra.mxu0 %v799
        %846 = vmatprep.subr.mxu0 0.0
        %847 = vmatpush1.xpose.msra.mxu0 %v802
        %848 = vmatprep.subr.mxu0 0.0
        %849 = vmatpush1.xpose.msra.mxu0 %v805
        %850 = vmatprep.subr.mxu0 0.0
        %851 = vmatpush1.xpose.msra.mxu0 %v808
        %852 = vmatprep.subr.mxu0 0.0
        %853 = vmatpush1.xpose.msra.mxu0 %v811
        %854 = vmatprep.subr.mxu0 0.0
        %855 = vmatpush1.xpose.msra.mxu0 %v814
        %856 = vmatprep.subr.mxu0 0.0
        %857 = vmatpush1.xpose.msra.mxu0 %v817
        %858 = vmatprep.subr.mxu0 0.0
        %859 = vmatpush1.xpose.msra.mxu0 %v820
        %860 = vmatprep.subr.mxu0 0.0
        %861 = vmatpush1.xpose.msra.mxu0 %v823
        %862 = vmatprep.subr.mxu0 0.0
        %863 = vmatpush1.xpose.msra.mxu0 %v826
        %864 = vmatprep.subr.mxu0 0.0
        %865 = vmatpush1.xpose.msra.mxu0 %v829
        %866 = vmatprep.subr.mxu0 0.0
        %867 = vmatpush1.xpose.msra.mxu0 %v832
        %868 = vmatprep.subr.mxu0 0.0
        %869 = vmatpush1.xpose.msra.mxu0 %v835
        %870 = vmatprep.subr.mxu0 0.0
        %871 = vmatpush1.xpose.msra.mxu0 %v838
        %872 = vmatprep.subr.mxu0 0.0
        %873 = vmatpush1.xpose.msra.mxu0 0.0
        %874 = vmatprep.subr.mxu0 0.0
        %875 = vmatpush1.xpose.msra.mxu0 0.0
        %876 = vmatprep.subr.mxu0 0.0
        %877 = vmatpush1.xpose.msra.mxu0 0.0
        %878 = vmatprep.subr.mxu0 0.0
        %879 = vmatpush1.xpose.msra.mxu0 0.0
        %880 = vmatprep.subr.mxu0 0.0
        %881 = vmatpush1.xpose.msra.mxu0 0.0
        %882 = vmatprep.subr.mxu0 0.0
        %883 = vmatpush1.xpose.msra.mxu0 0.0
        %884 = vmatprep.subr.mxu0 0.0
        %885 = vmatpush1.xpose.msra.mxu0 0.0
        %886 = vmatprep.subr.mxu0 0.0
        %887 = vmatpush1.xpose.msra.mxu0 0.0
        %888 = vmatprep.subr.mxu0 0.0
        %889 = vmatpush1.xpose.msra.mxu0 0.0
        %890 = vmatprep.subr.mxu0 0.0
        %891 = vmatpush1.xpose.msra.mxu0 0.0
        %892 = vmatprep.subr.mxu0 0.0
        %893 = vmatpush1.xpose.msra.mxu0 0.0
        %894 = vmatprep.subr.mxu0 0.0
        %895 = vmatpush1.xpose.msra.mxu0 0.0
        %896 = vmatprep.subr.mxu0 0.0
        %897 = vmatpush1.xpose.msra.mxu0 0.0
        %898 = vmatprep.subr.mxu0 0.0
        %899 = vmatpush1.xpose.msra.mxu0 0.0
        %900 = vmatprep.subr.mxu0 0.0
        %901 = vmatpush1.xpose.msra.mxu0 0.0
        %902 = vmatprep.subr.mxu0 0.0
        %903 = vmatpush1.xpose.msra.mxu0 0.0
        %904 = vmatprep.mubr.f32.mxu0 0.0
        %905 = vmatmul.mubr.f32.gmra.mrb[0].mxu0 %v745
        %v906 = vpop.f32.mrb[0].mxu0
        %v907 = vadd.f32 0.0, %v906
        %v908 = vpop.f32.mrb[0].mxu0
        %909 = vmatprep.mubr.f32.mxu0 0.0
        %910 = vmatmul.mubr.f32.gmra.mrb[0].mxu0 %v748
        %v911 = vpop.f32.mrb[0].mxu0
        %v912 = vadd.f32 0.0, %v911
        %v913 = vpop.f32.mrb[0].mxu0
        %914 = vmatprep.mubr.f32.mxu0 0.0
        %915 = vmatmul.mubr.f32.gmra.mrb[0].mxu0 %v751
        %v916 = vpop.f32.mrb[0].mxu0
        %v917 = vadd.f32 0.0, %v916
        %v918 = vpop.f32.mrb[0].mxu0
        %919 = vmatprep.mubr.f32.mxu0 0.0
        %920 = vmatmul.mubr.f32.gmra.mrb[0].mxu0 %v754
        %v921 = vpop.f32.mrb[0].mxu0
        %v922 = vadd.f32 0.0, %v921
        %v923 = vpop.f32.mrb[0].mxu0
        %924 = vmatprep.mubr.f32.mxu0 0.0
        %925 = vmatmul.mubr.f32.gmra.mrb[0].mxu0 %v757
        %v926 = vpop.f32.mrb[0].mxu0
        %v927 = vadd.f32 0.0, %v926
        %v928 = vpop.f32.mrb[0].mxu0
        %929 = vmatprep.mubr.f32.mxu0 0.0
        %930 = vmatmul.mubr.f32.gmra.mrb[0].mxu0 %v760
        %v931 = vpop.f32.mrb[0].mxu0
        %v932 = vadd.f32 0.0, %v931
        %v933 = vpop.f32.mrb[0].mxu0
        %934 = vmatprep.mubr.f32.mxu0 0.0
        %935 = vmatmul.mubr.f32.gmra.mrb[0].mxu0 %v763
        %v936 = vpop.f32.mrb[0].mxu0
        %v937 = vadd.f32 0.0, %v936
        %v938 = vpop.f32.mrb[0].mxu0
        %939 = vmatprep.mubr.f32.mxu0 0.0
        %940 = vmatmul.mubr.f32.gmra.mrb[0].mxu0 %v766
        %v941 = vpop.f32.mrb[0].mxu0
        %v942 = vadd.f32 0.0, %v941
        %v943 = vpop.f32.mrb[0].mxu0
        %944 = vmatprep.mubr.f32.mxu0 0.0
        %945 = vmatmul.mubr.f32.gmra.mrb[0].mxu0 %v769
        %v946 = vpop.f32.mrb[0].mxu0
        %v947 = vadd.f32 0.0, %v946
        %v948 = vpop.f32.mrb[0].mxu0
        %949 = vmatprep.mubr.f32.mxu0 0.0
        %950 = vmatmul.mubr.f32.gmra.mrb[0].mxu0 %v772
        %v951 = vpop.f32.mrb[0].mxu0
        %v952 = vadd.f32 0.0, %v951
        %v953 = vpop.f32.mrb[0].mxu0
        %954 = vmatprep.mubr.f32.mxu0 0.0
        %955 = vmatmul.mubr.f32.gmra.mrb[0].mxu0 %v775
        %v956 = vpop.f32.mrb[0].mxu0
        %v957 = vadd.f32 0.0, %v956
        %v958 = vpop.f32.mrb[0].mxu0
        %959 = vmatprep.mubr.f32.mxu0 0.0
        %960 = vmatmul.mubr.f32.gmra.mrb[0].mxu0 %v778
        %v961 = vpop.f32.mrb[0].mxu0
        %v962 = vadd.f32 0.0, %v961
        %v963 = vpop.f32.mrb[0].mxu0
        %964 = vmatprep.mubr.f32.mxu0 0.0
        %965 = vmatmul.mubr.f32.gmra.mrb[0].mxu0 %v781
        %v966 = vpop.f32.mrb[0].mxu0
        %v967 = vadd.f32 0.0, %v966
        %v968 = vpop.f32.mrb[0].mxu0
        %969 = vmatprep.mubr.f32.mxu0 0.0
        %970 = vmatmul.mubr.f32.gmra.mrb[0].mxu0 %v784
        %v971 = vpop.f32.mrb[0].mxu0
        %v972 = vadd.f32 0.0, %v971
        %v973 = vpop.f32.mrb[0].mxu0
        %974 = vmatprep.mubr.f32.mxu0 0.0
        %975 = vmatmul.mubr.f32.gmra.mrb[0].mxu0 %v787
        %v976 = vpop.f32.mrb[0].mxu0
        %v977 = vadd.f32 0.0, %v976
        %v978 = vpop.f32.mrb[0].mxu0
        %979 = vmatprep.mubr.f32.mxu0 0.0
        %980 = vmatmul.mubr.f32.gmra.mrb[0].mxu0 %v790
        %v981 = vpop.f32.mrb[0].mxu0
        %v982 = vadd.f32 0.0, %v981
        %v983 = vpop.f32.mrb[0].mxu0
        %984 = vdwg.mxu0
        %v986 = vsel %vm502, %v342, 0
        %v989 = vsel %vm502, %v343, 0
        %v992 = vsel %vm502, %v344, 0
        %v995 = vsel %vm502, %v345, 0
        %v998 = vsel %vm502, %v346, 0
        %v1001 = vsel %vm502, %v347, 0
        %v1004 = vsel %vm502, %v348, 0
        %v1007 = vsel %vm502, %v349, 0
        %v1010 = vsel %vm502, %v350, 0
        %v1013 = vsel %vm502, %v351, 0
        %v1016 = vsel %vm502, %v352, 0
        %v1019 = vsel %vm502, %v353, 0
        %v1022 = vsel %vm502, %v354, 0
        %v1025 = vsel %vm502, %v355, 0
        %v1028 = vsel %vm502, %v356, 0
        %v1031 = vsel %vm502, %v357, 0
        %v1034 = vsel %vm502, %v406, 0
        %v1037 = vsel %vm502, %v407, 0
        %v1040 = vsel %vm502, %v408, 0
        %v1043 = vsel %vm502, %v409, 0
        %v1046 = vsel %vm502, %v410, 0
        %v1049 = vsel %vm502, %v411, 0
        %v1052 = vsel %vm502, %v412, 0
        %v1055 = vsel %vm502, %v413, 0
        %v1058 = vsel %vm502, %v414, 0
        %v1061 = vsel %vm502, %v415, 0
        %v1064 = vsel %vm502, %v416, 0
        %v1067 = vsel %vm502, %v417, 0
        %v1070 = vsel %vm502, %v418, 0
        %v1073 = vsel %vm502, %v419, 0
        %v1076 = vsel %vm502, %v420, 0
        %v1079 = vsel %vm502, %v421, 0
        %1081 = vmatprep.subr.mxu0 0.0
        %1082 = vmatpush1.xpose.msra.mxu0 %v1034
        %1083 = vmatprep.subr.mxu0 0.0
        %1084 = vmatpush1.xpose.msra.mxu0 %v1037
        %1085 = vmatprep.subr.mxu0 0.0
        %1086 = vmatpush1.xpose.msra.mxu0 %v1040
        %1087 = vmatprep.subr.mxu0 0.0
        %1088 = vmatpush1.xpose.msra.mxu0 %v1043
        %1089 = vmatprep.subr.mxu0 0.0
        %1090 = vmatpush1.xpose.msra.mxu0 %v1046
        %1091 = vmatprep.subr.mxu0 0.0
        %1092 = vmatpush1.xpose.msra.mxu0 %v1049
        %1093 = vmatprep.subr.mxu0 0.0
        %1094 = vmatpush1.xpose.msra.mxu0 %v1052
        %1095 = vmatprep.subr.mxu0 0.0
        %1096 = vmatpush1.xpose.msra.mxu0 %v1055
        %1097 = vmatprep.subr.mxu0 0.0
        %1098 = vmatpush1.xpose.msra.mxu0 %v1058
        %1099 = vmatprep.subr.mxu0 0.0
        %1100 = vmatpush1.xpose.msra.mxu0 %v1061
        %1101 = vmatprep.subr.mxu0 0.0
        %1102 = vmatpush1.xpose.msra.mxu0 %v1064
        %1103 = vmatprep.subr.mxu0 0.0
        %1104 = vmatpush1.xpose.msra.mxu0 %v1067
        %1105 = vmatprep.subr.mxu0 0.0
        %1106 = vmatpush1.xpose.msra.mxu0 %v1070
        %1107 = vmatprep.subr.mxu0 0.0
        %1108 = vmatpush1.xpose.msra.mxu0 %v1073
        %1109 = vmatprep.subr.mxu0 0.0
        %1110 = vmatpush1.xpose.msra.mxu0 %v1076
        %1111 = vmatprep.subr.mxu0 0.0
        %1112 = vmatpush1.xpose.msra.mxu0 %v1079
        %1113 = vmatprep.subr.mxu0 0.0
        %1114 = vmatpush1.xpose.msra.mxu0 0.0
        %1115 = vmatprep.subr.mxu0 0.0
        %1116 = vmatpush1.xpose.msra.mxu0 0.0
        %1117 = vmatprep.subr.mxu0 0.0
        %1118 = vmatpush1.xpose.msra.mxu0 0.0
        %1119 = vmatprep.subr.mxu0 0.0
        %1120 = vmatpush1.xpose.msra.mxu0 0.0
        %1121 = vmatprep.subr.mxu0 0.0
        %1122 = vmatpush1.xpose.msra.mxu0 0.0
        %1123 = vmatprep.subr.mxu0 0.0
        %1124 = vmatpush1.xpose.msra.mxu0 0.0
        %1125 = vmatprep.subr.mxu0 0.0
        %1126 = vmatpush1.xpose.msra.mxu0 0.0
        %1127 = vmatprep.subr.mxu0 0.0
        %1128 = vmatpush1.xpose.msra.mxu0 0.0
        %1129 = vmatprep.subr.mxu0 0.0
        %1130 = vmatpush1.xpose.msra.mxu0 0.0
        %1131 = vmatprep.subr.mxu0 0.0
        %1132 = vmatpush1.xpose.msra.mxu0 0.0
        %1133 = vmatprep.subr.mxu0 0.0
        %1134 = vmatpush1.xpose.msra.mxu0 0.0
        %1135 = vmatprep.subr.mxu0 0.0
        %1136 = vmatpush1.xpose.msra.mxu0 0.0
        %1137 = vmatprep.subr.mxu0 0.0
        %1138 = vmatpush1.xpose.msra.mxu0 0.0
        %1139 = vmatprep.subr.mxu0 0.0
        %1140 = vmatpush1.xpose.msra.mxu0 0.0
        %1141 = vmatprep.subr.mxu0 0.0
        %1142 = vmatpush1.xpose.msra.mxu0 0.0
        %1143 = vmatprep.subr.mxu0 0.0
        %1144 = vmatpush1.xpose.msra.mxu0 0.0
        %1145 = vmatprep.mubr.f32.mxu0 0.0
        %1146 = vmatmul.mubr.f32.gmra.mrb[0].mxu0 %v986
        %v1147 = vpop.f32.mrb[0].mxu0
        %v1148 = vadd.f32 0.0, %v1147
        %v1149 = vpop.f32.mrb[0].mxu0
        %1150 = vmatprep.mubr.f32.mxu0 0.0
        %1151 = vmatmul.mubr.f32.gmra.mrb[0].mxu0 %v989
        %v1152 = vpop.f32.mrb[0].mxu0
        %v1153 = vadd.f32 0.0, %v1152
        %v1154 = vpop.f32.mrb[0].mxu0
        %1155 = vmatprep.mubr.f32.mxu0 0.0
        %1156 = vmatmul.mubr.f32.gmra.mrb[0].mxu0 %v992
        %v1157 = vpop.f32.mrb[0].mxu0
        %v1158 = vadd.f32 0.0, %v1157
        %v1159 = vpop.f32.mrb[0].mxu0
        %1160 = vmatprep.mubr.f32.mxu0 0.0
        %1161 = vmatmul.mubr.f32.gmra.mrb[0].mxu0 %v995
        %v1162 = vpop.f32.mrb[0].mxu0
        %v1163 = vadd.f32 0.0, %v1162
        %v1164 = vpop.f32.mrb[0].mxu0
        %1165 = vmatprep.mubr.f32.mxu0 0.0
        %1166 = vmatmul.mubr.f32.gmra.mrb[0].mxu0 %v998
        %v1167 = vpop.f32.mrb[0].mxu0
        %v1168 = vadd.f32 0.0, %v1167
        %v1169 = vpop.f32.mrb[0].mxu0
        %1170 = vmatprep.mubr.f32.mxu0 0.0
        %1171 = vmatmul.mubr.f32.gmra.mrb[0].mxu0 %v1001
        %v1172 = vpop.f32.mrb[0].mxu0
        %v1173 = vadd.f32 0.0, %v1172
        %v1174 = vpop.f32.mrb[0].mxu0
        %1175 = vmatprep.mubr.f32.mxu0 0.0
        %1176 = vmatmul.mubr.f32.gmra.mrb[0].mxu0 %v1004
        %v1177 = vpop.f32.mrb[0].mxu0
        %v1178 = vadd.f32 0.0, %v1177
        %v1179 = vpop.f32.mrb[0].mxu0
        %1180 = vmatprep.mubr.f32.mxu0 0.0
        %1181 = vmatmul.mubr.f32.gmra.mrb[0].mxu0 %v1007
        %v1182 = vpop.f32.mrb[0].mxu0
        %v1183 = vadd.f32 0.0, %v1182
        %v1184 = vpop.f32.mrb[0].mxu0
        %1185 = vmatprep.mubr.f32.mxu0 0.0
        %1186 = vmatmul.mubr.f32.gmra.mrb[0].mxu0 %v1010
        %v1187 = vpop.f32.mrb[0].mxu0
        %v1188 = vadd.f32 0.0, %v1187
        %v1189 = vpop.f32.mrb[0].mxu0
        %1190 = vmatprep.mubr.f32.mxu0 0.0
        %1191 = vmatmul.mubr.f32.gmra.mrb[0].mxu0 %v1013
        %v1192 = vpop.f32.mrb[0].mxu0
        %v1193 = vadd.f32 0.0, %v1192
        %v1194 = vpop.f32.mrb[0].mxu0
        %1195 = vmatprep.mubr.f32.mxu0 0.0
        %1196 = vmatmul.mubr.f32.gmra.mrb[0].mxu0 %v1016
        %v1197 = vpop.f32.mrb[0].mxu0
        %v1198 = vadd.f32 0.0, %v1197
        %v1199 = vpop.f32.mrb[0].mxu0
        %1200 = vmatprep.mubr.f32.mxu0 0.0
        %1201 = vmatmul.mubr.f32.gmra.mrb[0].mxu0 %v1019
        %v1202 = vpop.f32.mrb[0].mxu0
        %v1203 = vadd.f32 0.0, %v1202
        %v1204 = vpop.f32.mrb[0].mxu0
        %1205 = vmatprep.mubr.f32.mxu0 0.0
        %1206 = vmatmul.mubr.f32.gmra.mrb[0].mxu0 %v1022
        %v1207 = vpop.f32.mrb[0].mxu0
        %v1208 = vadd.f32 0.0, %v1207
        %v1209 = vpop.f32.mrb[0].mxu0
        %1210 = vmatprep.mubr.f32.mxu0 0.0
        %1211 = vmatmul.mubr.f32.gmra.mrb[0].mxu0 %v1025
        %v1212 = vpop.f32.mrb[0].mxu0
        %v1213 = vadd.f32 0.0, %v1212
        %v1214 = vpop.f32.mrb[0].mxu0
        %1215 = vmatprep.mubr.f32.mxu0 0.0
        %1216 = vmatmul.mubr.f32.gmra.mrb[0].mxu0 %v1028
        %v1217 = vpop.f32.mrb[0].mxu0
        %v1218 = vadd.f32 0.0, %v1217
        %v1219 = vpop.f32.mrb[0].mxu0
        %1220 = vmatprep.mubr.f32.mxu0 0.0
        %1221 = vmatmul.mubr.f32.gmra.mrb[0].mxu0 %v1031
        %v1222 = vpop.f32.mrb[0].mxu0
        %v1223 = vadd.f32 0.0, %v1222
        %v1224 = vpop.f32.mrb[0].mxu0
        %1225 = vdwg.mxu0
        %v1227 = vsel %vm502, %v358, 0
        %v1230 = vsel %vm502, %v359, 0
        %v1233 = vsel %vm502, %v360, 0
        %v1236 = vsel %vm502, %v361, 0
        %v1239 = vsel %vm502, %v362, 0
        %v1242 = vsel %vm502, %v363, 0
        %v1245 = vsel %vm502, %v364, 0
        %v1248 = vsel %vm502, %v365, 0
        %v1251 = vsel %vm502, %v366, 0
        %v1254 = vsel %vm502, %v367, 0
        %v1257 = vsel %vm502, %v368, 0
        %v1260 = vsel %vm502, %v369, 0
        %v1263 = vsel %vm502, %v370, 0
        %v1266 = vsel %vm502, %v371, 0
        %v1269 = vsel %vm502, %v372, 0
        %v1272 = vsel %vm502, %v373, 0
        %v1275 = vsel %vm502, %v422, 0
        %v1278 = vsel %vm502, %v423, 0
        %v1281 = vsel %vm502, %v424, 0
        %v1284 = vsel %vm502, %v425, 0
        %v1287 = vsel %vm502, %v426, 0
        %v1290 = vsel %vm502, %v427, 0
        %v1293 = vsel %vm502, %v428, 0
        %v1296 = vsel %vm502, %v429, 0
        %v1299 = vsel %vm502, %v430, 0
        %v1302 = vsel %vm502, %v431, 0
        %v1305 = vsel %vm502, %v432, 0
        %v1308 = vsel %vm502, %v433, 0
        %v1311 = vsel %vm502, %v434, 0
        %v1314 = vsel %vm502, %v435, 0
        %v1317 = vsel %vm502, %v436, 0
        %v1320 = vsel %vm502, %v437, 0
        %1322 = vmatprep.subr.mxu0 0.0
        %1323 = vmatpush1.xpose.msra.mxu0 %v1275
        %1324 = vmatprep.subr.mxu0 0.0
        %1325 = vmatpush1.xpose.msra.mxu0 %v1278
        %1326 = vmatprep.subr.mxu0 0.0
        %1327 = vmatpush1.xpose.msra.mxu0 %v1281
        %1328 = vmatprep.subr.mxu0 0.0
        %1329 = vmatpush1.xpose.msra.mxu0 %v1284
        %1330 = vmatprep.subr.mxu0 0.0
        %1331 = vmatpush1.xpose.msra.mxu0 %v1287
        %1332 = vmatprep.subr.mxu0 0.0
        %1333 = vmatpush1.xpose.msra.mxu0 %v1290
        %1334 = vmatprep.subr.mxu0 0.0
        %1335 = vmatpush1.xpose.msra.mxu0 %v1293
        %1336 = vmatprep.subr.mxu0 0.0
        %1337 = vmatpush1.xpose.msra.mxu0 %v1296
        %1338 = vmatprep.subr.mxu0 0.0
        %1339 = vmatpush1.xpose.msra.mxu0 %v1299
        %1340 = vmatprep.subr.mxu0 0.0
        %1341 = vmatpush1.xpose.msra.mxu0 %v1302
        %1342 = vmatprep.subr.mxu0 0.0
        %1343 = vmatpush1.xpose.msra.mxu0 %v1305
        %1344 = vmatprep.subr.mxu0 0.0
        %1345 = vmatpush1.xpose.msra.mxu0 %v1308
        %1346 = vmatprep.subr.mxu0 0.0
        %1347 = vmatpush1.xpose.msra.mxu0 %v1311
        %1348 = vmatprep.subr.mxu0 0.0
        %1349 = vmatpush1.xpose.msra.mxu0 %v1314
        %1350 = vmatprep.subr.mxu0 0.0
        %1351 = vmatpush1.xpose.msra.mxu0 %v1317
        %1352 = vmatprep.subr.mxu0 0.0
        %1353 = vmatpush1.xpose.msra.mxu0 %v1320
        %1354 = vmatprep.subr.mxu0 0.0
        %1355 = vmatpush1.xpose.msra.mxu0 0.0
        %1356 = vmatprep.subr.mxu0 0.0
        %1357 = vmatpush1.xpose.msra.mxu0 0.0
        %1358 = vmatprep.subr.mxu0 0.0
        %1359 = vmatpush1.xpose.msra.mxu0 0.0
        %1360 = vmatprep.subr.mxu0 0.0
        %1361 = vmatpush1.xpose.msra.mxu0 0.0
        %1362 = vmatprep.subr.mxu0 0.0
        %1363 = vmatpush1.xpose.msra.mxu0 0.0
        %1364 = vmatprep.subr.mxu0 0.0
        %1365 = vmatpush1.xpose.msra.mxu0 0.0
        %1366 = vmatprep.subr.mxu0 0.0
        %1367 = vmatpush1.xpose.msra.mxu0 0.0
        %1368 = vmatprep.subr.mxu0 0.0
        %1369 = vmatpush1.xpose.msra.mxu0 0.0
        %1370 = vmatprep.subr.mxu0 0.0
        %1371 = vmatpush1.xpose.msra.mxu0 0.0
        %1372 = vmatprep.subr.mxu0 0.0
        %1373 = vmatpush1.xpose.msra.mxu0 0.0
        %1374 = vmatprep.subr.mxu0 0.0
        %1375 = vmatpush1.xpose.msra.mxu0 0.0
        %1376 = vmatprep.subr.mxu0 0.0
        %1377 = vmatpush1.xpose.msra.mxu0 0.0
        %1378 = vmatprep.subr.mxu0 0.0
        %1379 = vmatpush1.xpose.msra.mxu0 0.0
        %1380 = vmatprep.subr.mxu0 0.0
        %1381 = vmatpush1.xpose.msra.mxu0 0.0
        %1382 = vmatprep.subr.mxu0 0.0
        %1383 = vmatpush1.xpose.msra.mxu0 0.0
        %1384 = vmatprep.subr.mxu0 0.0
        %1385 = vmatpush1.xpose.msra.mxu0 0.0
        %1386 = vmatprep.mubr.f32.mxu0 0.0
        %1387 = vmatmul.mubr.f32.gmra.mrb[0].mxu0 %v1227
        %v1388 = vpop.f32.mrb[0].mxu0
        %v1389 = vadd.f32 0.0, %v1388
        %v1390 = vpop.f32.mrb[0].mxu0
        %1391 = vmatprep.mubr.f32.mxu0 0.0
        %1392 = vmatmul.mubr.f32.gmra.mrb[0].mxu0 %v1230
        %v1393 = vpop.f32.mrb[0].mxu0
        %v1394 = vadd.f32 0.0, %v1393
        %v1395 = vpop.f32.mrb[0].mxu0
        %1396 = vmatprep.mubr.f32.mxu0 0.0
        %1397 = vmatmul.mubr.f32.gmra.mrb[0].mxu0 %v1233
        %v1398 = vpop.f32.mrb[0].mxu0
        %v1399 = vadd.f32 0.0, %v1398
        %v1400 = vpop.f32.mrb[0].mxu0
        %1401 = vmatprep.mubr.f32.mxu0 0.0
        %1402 = vmatmul.mubr.f32.gmra.mrb[0].mxu0 %v1236
        %v1403 = vpop.f32.mrb[0].mxu0
        %v1404 = vadd.f32 0.0, %v1403
        %v1405 = vpop.f32.mrb[0].mxu0
        %1406 = vmatprep.mubr.f32.mxu0 0.0
        %1407 = vmatmul.mubr.f32.gmra.mrb[0].mxu0 %v1239
        %v1408 = vpop.f32.mrb[0].mxu0
        %v1409 = vadd.f32 0.0, %v1408
        %v1410 = vpop.f32.mrb[0].mxu0
        %1411 = vmatprep.mubr.f32.mxu0 0.0
        %1412 = vmatmul.mubr.f32.gmra.mrb[0].mxu0 %v1242
        %v1413 = vpop.f32.mrb[0].mxu0
        %v1414 = vadd.f32 0.0, %v1413
        %v1415 = vpop.f32.mrb[0].mxu0
        %1416 = vmatprep.mubr.f32.mxu0 0.0
        %1417 = vmatmul.mubr.f32.gmra.mrb[0].mxu0 %v1245
        %v1418 = vpop.f32.mrb[0].mxu0
        %v1419 = vadd.f32 0.0, %v1418
        %v1420 = vpop.f32.mrb[0].mxu0
        %1421 = vmatprep.mubr.f32.mxu0 0.0
        %1422 = vmatmul.mubr.f32.gmra.mrb[0].mxu0 %v1248
        %v1423 = vpop.f32.mrb[0].mxu0
        %v1424 = vadd.f32 0.0, %v1423
        %v1425 = vpop.f32.mrb[0].mxu0
        %1426 = vmatprep.mubr.f32.mxu0 0.0
        %1427 = vmatmul.mubr.f32.gmra.mrb[0].mxu0 %v1251
        %v1428 = vpop.f32.mrb[0].mxu0
        %v1429 = vadd.f32 0.0, %v1428
        %v1430 = vpop.f32.mrb[0].mxu0
        %1431 = vmatprep.mubr.f32.mxu0 0.0
        %1432 = vmatmul.mubr.f32.gmra.mrb[0].mxu0 %v1254
        %v1433 = vpop.f32.mrb[0].mxu0
        %v1434 = vadd.f32 0.0, %v1433
        %v1435 = vpop.f32.mrb[0].mxu0
        %1436 = vmatprep.mubr.f32.mxu0 0.0
        %1437 = vmatmul.mubr.f32.gmra.mrb[0].mxu0 %v1257
        %v1438 = vpop.f32.mrb[0].mxu0
        %v1439 = vadd.f32 0.0, %v1438
        %v1440 = vpop.f32.mrb[0].mxu0
        %1441 = vmatprep.mubr.f32.mxu0 0.0
        %1442 = vmatmul.mubr.f32.gmra.mrb[0].mxu0 %v1260
        %v1443 = vpop.f32.mrb[0].mxu0
        %v1444 = vadd.f32 0.0, %v1443
        %v1445 = vpop.f32.mrb[0].mxu0
        %1446 = vmatprep.mubr.f32.mxu0 0.0
        %1447 = vmatmul.mubr.f32.gmra.mrb[0].mxu0 %v1263
        %v1448 = vpop.f32.mrb[0].mxu0
        %v1449 = vadd.f32 0.0, %v1448
        %v1450 = vpop.f32.mrb[0].mxu0
        %1451 = vmatprep.mubr.f32.mxu0 0.0
        %1452 = vmatmul.mubr.f32.gmra.mrb[0].mxu0 %v1266
        %v1453 = vpop.f32.mrb[0].mxu0
        %v1454 = vadd.f32 0.0, %v1453
        %v1455 = vpop.f32.mrb[0].mxu0
        %1456 = vmatprep.mubr.f32.mxu0 0.0
        %1457 = vmatmul.mubr.f32.gmra.mrb[0].mxu0 %v1269
        %v1458 = vpop.f32.mrb[0].mxu0
        %v1459 = vadd.f32 0.0, %v1458
        %v1460 = vpop.f32.mrb[0].mxu0
        %1461 = vmatprep.mubr.f32.mxu0 0.0
        %1462 = vmatmul.mubr.f32.gmra.mrb[0].mxu0 %v1272
        %v1463 = vpop.f32.mrb[0].mxu0
        %v1464 = vadd.f32 0.0, %v1463
        %v1465 = vpop.f32.mrb[0].mxu0
        %1466 = vdwg.mxu0
        %v1467 = vmul.f32 %v666, 0.125
        %v1468 = vmul.f32 %v671, 0.125
        %v1469 = vmul.f32 %v676, 0.125
        %v1470 = vmul.f32 %v681, 0.125
        %v1471 = vmul.f32 %v686, 0.125
        %v1472 = vmul.f32 %v691, 0.125
        %v1473 = vmul.f32 %v696, 0.125
        %v1474 = vmul.f32 %v701, 0.125
        %v1475 = vmul.f32 %v706, 0.125
        %v1476 = vmul.f32 %v711, 0.125
        %v1477 = vmul.f32 %v716, 0.125
        %v1478 = vmul.f32 %v721, 0.125
        %v1479 = vmul.f32 %v726, 0.125
        %v1480 = vmul.f32 %v731, 0.125
        %v1481 = vmul.f32 %v736, 0.125
        %v1482 = vmul.f32 %v741, 0.125
        %v1483 = vmul.f32 %v907, 0.125
        %v1484 = vmul.f32 %v912, 0.125
        %v1485 = vmul.f32 %v917, 0.125
        %v1486 = vmul.f32 %v922, 0.125
        %v1487 = vmul.f32 %v927, 0.125
        %v1488 = vmul.f32 %v932, 0.125
        %v1489 = vmul.f32 %v937, 0.125
        %v1490 = vmul.f32 %v942, 0.125
        %v1491 = vmul.f32 %v947, 0.125
        %v1492 = vmul.f32 %v952, 0.125
        %v1493 = vmul.f32 %v957, 0.125
        %v1494 = vmul.f32 %v962, 0.125
        %v1495 = vmul.f32 %v967, 0.125
        %v1496 = vmul.f32 %v972, 0.125
        %v1497 = vmul.f32 %v977, 0.125
        %v1498 = vmul.f32 %v982, 0.125
        %v1499 = vmul.f32 %v1148, 0.125
        %v1500 = vmul.f32 %v1153, 0.125
        %v1501 = vmul.f32 %v1158, 0.125
        %v1502 = vmul.f32 %v1163, 0.125
        %v1503 = vmul.f32 %v1168, 0.125
        %v1504 = vmul.f32 %v1173, 0.125
        %v1505 = vmul.f32 %v1178, 0.125
        %v1506 = vmul.f32 %v1183, 0.125
        %v1507 = vmul.f32 %v1188, 0.125
        %v1508 = vmul.f32 %v1193, 0.125
        %v1509 = vmul.f32 %v1198, 0.125
        %v1510 = vmul.f32 %v1203, 0.125
        %v1511 = vmul.f32 %v1208, 0.125
        %v1512 = vmul.f32 %v1213, 0.125
        %v1513 = vmul.f32 %v1218, 0.125
        %v1514 = vmul.f32 %v1223, 0.125
        %v1515 = vmul.f32 %v1389, 0.125
        %v1516 = vmul.f32 %v1394, 0.125
        %v1517 = vmul.f32 %v1399, 0.125
        %v1518 = vmul.f32 %v1404, 0.125
        %v1519 = vmul.f32 %v1409, 0.125
        %v1520 = vmul.f32 %v1414, 0.125
        %v1521 = vmul.f32 %v1419, 0.125
        %v1522 = vmul.f32 %v1424, 0.125
        %v1523 = vmul.f32 %v1429, 0.125
        %v1524 = vmul.f32 %v1434, 0.125
        %v1525 = vmul.f32 %v1439, 0.125
        %v1526 = vmul.f32 %v1444, 0.125
        %v1527 = vmul.f32 %v1449, 0.125
        %v1528 = vmul.f32 %v1454, 0.125
        %v1529 = vmul.f32 %v1459, 0.125
        %v1530 = vmul.f32 %v1464, 0.125
        %1531 = vmax.xlane.f32.xlu0 %v1467
        %v1532 = vpop.xlane.xlu0 %1531
        %1533 = vmax.xlane.f32.xlu0 %v1468
        %v1534 = vpop.xlane.xlu0 %1533
        %1535 = vmax.xlane.f32.xlu0 %v1469
        %v1536 = vpop.xlane.xlu0 %1535
        %1537 = vmax.xlane.f32.xlu0 %v1470
        %v1538 = vpop.xlane.xlu0 %1537
        %1539 = vmax.xlane.f32.xlu0 %v1471
        %v1540 = vpop.xlane.xlu0 %1539
        %1541 = vmax.xlane.f32.xlu0 %v1472
        %v1542 = vpop.xlane.xlu0 %1541
        %1543 = vmax.xlane.f32.xlu0 %v1473
        %v1544 = vpop.xlane.xlu0 %1543
        %1545 = vmax.xlane.f32.xlu0 %v1474
        %v1546 = vpop.xlane.xlu0 %1545
        %1547 = vmax.xlane.f32.xlu0 %v1475
        %v1548 = vpop.xlane.xlu0 %1547
        %1549 = vmax.xlane.f32.xlu0 %v1476
        %v1550 = vpop.xlane.xlu0 %1549
        %1551 = vmax.xlane.f32.xlu0 %v1477
        %v1552 = vpop.xlane.xlu0 %1551
        %1553 = vmax.xlane.f32.xlu0 %v1478
        %v1554 = vpop.xlane.xlu0 %1553
        %1555 = vmax.xlane.f32.xlu0 %v1479
        %v1556 = vpop.xlane.xlu0 %1555
        %1557 = vmax.xlane.f32.xlu0 %v1480
        %v1558 = vpop.xlane.xlu0 %1557
        %1559 = vmax.xlane.f32.xlu0 %v1481
        %v1560 = vpop.xlane.xlu0 %1559
        %1561 = vmax.xlane.f32.xlu0 %v1482
        %v1562 = vpop.xlane.xlu0 %1561
        %1563 = vmax.xlane.f32.xlu0 %v1483
        %v1564 = vpop.xlane.xlu0 %1563
        %1565 = vmax.xlane.f32.xlu0 %v1484
        %v1566 = vpop.xlane.xlu0 %1565
        %1567 = vmax.xlane.f32.xlu0 %v1485
        %v1568 = vpop.xlane.xlu0 %1567
        %1569 = vmax.xlane.f32.xlu0 %v1486
        %v1570 = vpop.xlane.xlu0 %1569
        %1571 = vmax.xlane.f32.xlu0 %v1487
        %v1572 = vpop.xlane.xlu0 %1571
        %1573 = vmax.xlane.f32.xlu0 %v1488
        %v1574 = vpop.xlane.xlu0 %1573
        %1575 = vmax.xlane.f32.xlu0 %v1489
        %v1576 = vpop.xlane.xlu0 %1575
        %1577 = vmax.xlane.f32.xlu0 %v1490
        %v1578 = vpop.xlane.xlu0 %1577
        %1579 = vmax.xlane.f32.xlu0 %v1491
        %v1580 = vpop.xlane.xlu0 %1579
        %1581 = vmax.xlane.f32.xlu0 %v1492
        %v1582 = vpop.xlane.xlu0 %1581
        %1583 = vmax.xlane.f32.xlu0 %v1493
        %v1584 = vpop.xlane.xlu0 %1583
        %1585 = vmax.xlane.f32.xlu0 %v1494
        %v1586 = vpop.xlane.xlu0 %1585
        %1587 = vmax.xlane.f32.xlu0 %v1495
        %v1588 = vpop.xlane.xlu0 %1587
        %1589 = vmax.xlane.f32.xlu0 %v1496
        %v1590 = vpop.xlane.xlu0 %1589
        %1591 = vmax.xlane.f32.xlu0 %v1497
        %v1592 = vpop.xlane.xlu0 %1591
        %1593 = vmax.xlane.f32.xlu0 %v1498
        %v1594 = vpop.xlane.xlu0 %1593
        %1595 = vmax.xlane.f32.xlu0 %v1499
        %v1596 = vpop.xlane.xlu0 %1595
        %1597 = vmax.xlane.f32.xlu0 %v1500
        %v1598 = vpop.xlane.xlu0 %1597
        %1599 = vmax.xlane.f32.xlu0 %v1501
        %v1600 = vpop.xlane.xlu0 %1599
        %1601 = vmax.xlane.f32.xlu0 %v1502
        %v1602 = vpop.xlane.xlu0 %1601
        %1603 = vmax.xlane.f32.xlu0 %v1503
        %v1604 = vpop.xlane.xlu0 %1603
        %1605 = vmax.xlane.f32.xlu0 %v1504
        %v1606 = vpop.xlane.xlu0 %1605
        %1607 = vmax.xlane.f32.xlu0 %v1505
        %v1608 = vpop.xlane.xlu0 %1607
        %1609 = vmax.xlane.f32.xlu0 %v1506
        %v1610 = vpop.xlane.xlu0 %1609
        %1611 = vmax.xlane.f32.xlu0 %v1507
        %v1612 = vpop.xlane.xlu0 %1611
        %1613 = vmax.xlane.f32.xlu0 %v1508
        %v1614 = vpop.xlane.xlu0 %1613
        %1615 = vmax.xlane.f32.xlu0 %v1509
        %v1616 = vpop.xlane.xlu0 %1615
        %1617 = vmax.xlane.f32.xlu0 %v1510
        %v1618 = vpop.xlane.xlu0 %1617
        %1619 = vmax.xlane.f32.xlu0 %v1511
        %v1620 = vpop.xlane.xlu0 %1619
        %1621 = vmax.xlane.f32.xlu0 %v1512
        %v1622 = vpop.xlane.xlu0 %1621
        %1623 = vmax.xlane.f32.xlu0 %v1513
        %v1624 = vpop.xlane.xlu0 %1623
        %1625 = vmax.xlane.f32.xlu0 %v1514
        %v1626 = vpop.xlane.xlu0 %1625
        %1627 = vmax.xlane.f32.xlu0 %v1515
        %v1628 = vpop.xlane.xlu0 %1627
        %1629 = vmax.xlane.f32.xlu0 %v1516
        %v1630 = vpop.xlane.xlu0 %1629
        %1631 = vmax.xlane.f32.xlu0 %v1517
        %v1632 = vpop.xlane.xlu0 %1631
        %1633 = vmax.xlane.f32.xlu0 %v1518
        %v1634 = vpop.xlane.xlu0 %1633
        %1635 = vmax.xlane.f32.xlu0 %v1519
        %v1636 = vpop.xlane.xlu0 %1635
        %1637 = vmax.xlane.f32.xlu0 %v1520
        %v1638 = vpop.xlane.xlu0 %1637
        %1639 = vmax.xlane.f32.xlu0 %v1521
        %v1640 = vpop.xlane.xlu0 %1639
        %1641 = vmax.xlane.f32.xlu0 %v1522
        %v1642 = vpop.xlane.xlu0 %1641
        %1643 = vmax.xlane.f32.xlu0 %v1523
        %v1644 = vpop.xlane.xlu0 %1643
        %1645 = vmax.xlane.f32.xlu0 %v1524
        %v1646 = vpop.xlane.xlu0 %1645
        %1647 = vmax.xlane.f32.xlu0 %v1525
        %v1648 = vpop.xlane.xlu0 %1647
        %1649 = vmax.xlane.f32.xlu0 %v1526
        %v1650 = vpop.xlane.xlu0 %1649
        %1651 = vmax.xlane.f32.xlu0 %v1527
        %v1652 = vpop.xlane.xlu0 %1651
        %1653 = vmax.xlane.f32.xlu0 %v1528
        %v1654 = vpop.xlane.xlu0 %1653
        %1655 = vmax.xlane.f32.xlu0 %v1529
        %v1656 = vpop.xlane.xlu0 %1655
        %1657 = vmax.xlane.f32.xlu0 %v1530
        %v1658 = vpop.xlane.xlu0 %1657
        %v1659 = vsub.f32 %v1467, %v1532
        %v1660 = vsub.f32 %v1468, %v1534
        %v1661 = vsub.f32 %v1469, %v1536
        %v1662 = vsub.f32 %v1470, %v1538
        %v1663 = vsub.f32 %v1471, %v1540
        %v1664 = vsub.f32 %v1472, %v1542
        %v1665 = vsub.f32 %v1473, %v1544
        %v1666 = vsub.f32 %v1474, %v1546
        %v1667 = vsub.f32 %v1475, %v1548
        %v1668 = vsub.f32 %v1476, %v1550
        %v1669 = vsub.f32 %v1477, %v1552
        %v1670 = vsub.f32 %v1478, %v1554
        %v1671 = vsub.f32 %v1479, %v1556
        %v1672 = vsub.f32 %v1480, %v1558
        %v1673 = vsub.f32 %v1481, %v1560
        %v1674 = vsub.f32 %v1482, %v1562
        %v1675 = vsub.f32 %v1483, %v1564
        %v1676 = vsub.f32 %v1484, %v1566
        %v1677 = vsub.f32 %v1485, %v1568
        %v1678 = vsub.f32 %v1486, %v1570
        %v1679 = vsub.f32 %v1487, %v1572
        %v1680 = vsub.f32 %v1488, %v1574
        %v1681 = vsub.f32 %v1489, %v1576
        %v1682 = vsub.f32 %v1490, %v1578
        %v1683 = vsub.f32 %v1491, %v1580
        %v1684 = vsub.f32 %v1492, %v1582
        %v1685 = vsub.f32 %v1493, %v1584
        %v1686 = vsub.f32 %v1494, %v1586
        %v1687 = vsub.f32 %v1495, %v1588
        %v1688 = vsub.f32 %v1496, %v1590
        %v1689 = vsub.f32 %v1497, %v1592
        %v1690 = vsub.f32 %v1498, %v1594
        %v1691 = vsub.f32 %v1499, %v1596
        %v1692 = vsub.f32 %v1500, %v1598
        %v1693 = vsub.f32 %v1501, %v1600
        %v1694 = vsub.f32 %v1502, %v1602
        %v1695 = vsub.f32 %v1503, %v1604
        %v1696 = vsub.f32 %v1504, %v1606
        %v1697 = vsub.f32 %v1505, %v1608
        %v1698 = vsub.f32 %v1506, %v1610
        %v1699 = vsub.f32 %v1507, %v1612
        %v1700 = vsub.f32 %v1508, %v1614
        %v1701 = vsub.f32 %v1509, %v1616
        %v1702 = vsub.f32 %v1510, %v1618
        %v1703 = vsub.f32 %v1511, %v1620
        %v1704 = vsub.f32 %v1512, %v1622
        %v1705 = vsub.f32 %v1513, %v1624
        %v1706 = vsub.f32 %v1514, %v1626
        %v1707 = vsub.f32 %v1515, %v1628
        %v1708 = vsub.f32 %v1516, %v1630
        %v1709 = vsub.f32 %v1517, %v1632
        %v1710 = vsub.f32 %v1518, %v1634
        %v1711 = vsub.f32 %v1519, %v1636
        %v1712 = vsub.f32 %v1520, %v1638
        %v1713 = vsub.f32 %v1521, %v1640
        %v1714 = vsub.f32 %v1522, %v1642
        %v1715 = vsub.f32 %v1523, %v1644
        %v1716 = vsub.f32 %v1524, %v1646
        %v1717 = vsub.f32 %v1525, %v1648
        %v1718 = vsub.f32 %v1526, %v1650
        %v1719 = vsub.f32 %v1527, %v1652
        %v1720 = vsub.f32 %v1528, %v1654
        %v1721 = vsub.f32 %v1529, %v1656
        %v1722 = vsub.f32 %v1530, %v1658
        %v1723 = vmul.f32 %v1659, 1.442695
        %v1724 = vpow.pop %v1723
        %v1725 = vmul.f32 %v1660, 1.442695
        %v1726 = vpow.pop %v1725
        %v1727 = vmul.f32 %v1661, 1.442695
        %v1728 = vpow.pop %v1727
        %v1729 = vmul.f32 %v1662, 1.442695
        %v1730 = vpow.pop %v1729
        %v1731 = vmul.f32 %v1663, 1.442695
        %v1732 = vpow.pop %v1731
        %v1733 = vmul.f32 %v1664, 1.442695
        %v1734 = vpow.pop %v1733
        %v1735 = vmul.f32 %v1665, 1.442695
        %v1736 = vpow.pop %v1735
        %v1737 = vmul.f32 %v1666, 1.442695
        %v1738 = vpow.pop %v1737
        %v1739 = vmul.f32 %v1667, 1.442695
        %v1740 = vpow.pop %v1739
        %v1741 = vmul.f32 %v1668, 1.442695
        %v1742 = vpow.pop %v1741
        %v1743 = vmul.f32 %v1669, 1.442695
        %v1744 = vpow.pop %v1743
        %v1745 = vmul.f32 %v1670, 1.442695
        %v1746 = vpow.pop %v1745
        %v1747 = vmul.f32 %v1671, 1.442695
        %v1748 = vpow.pop %v1747
        %v1749 = vmul.f32 %v1672, 1.442695
        %v1750 = vpow.pop %v1749
        %v1751 = vmul.f32 %v1673, 1.442695
        %v1752 = vpow.pop %v1751
        %v1753 = vmul.f32 %v1674, 1.442695
        %v1754 = vpow.pop %v1753
        %v1755 = vmul.f32 %v1675, 1.442695
        %v1756 = vpow.pop %v1755
        %v1757 = vmul.f32 %v1676, 1.442695
        %v1758 = vpow.pop %v1757
        %v1759 = vmul.f32 %v1677, 1.442695
        %v1760 = vpow.pop %v1759
        %v1761 = vmul.f32 %v1678, 1.442695
        %v1762 = vpow.pop %v1761
        %v1763 = vmul.f32 %v1679, 1.442695
        %v1764 = vpow.pop %v1763
        %v1765 = vmul.f32 %v1680, 1.442695
        %v1766 = vpow.pop %v1765
        %v1767 = vmul.f32 %v1681, 1.442695
        %v1768 = vpow.pop %v1767
        %v1769 = vmul.f32 %v1682, 1.442695
        %v1770 = vpow.pop %v1769
        %v1771 = vmul.f32 %v1683, 1.442695
        %v1772 = vpow.pop %v1771
        %v1773 = vmul.f32 %v1684, 1.442695
        %v1774 = vpow.pop %v1773
        %v1775 = vmul.f32 %v1685, 1.442695
        %v1776 = vpow.pop %v1775
        %v1777 = vmul.f32 %v1686, 1.442695
        %v1778 = vpow.pop %v1777
        %v1779 = vmul.f32 %v1687, 1.442695
        %v1780 = vpow.pop %v1779
        %v1781 = vmul.f32 %v1688, 1.442695
        %v1782 = vpow.pop %v1781
        %v1783 = vmul.f32 %v1689, 1.442695
        %v1784 = vpow.pop %v1783
        %v1785 = vmul.f32 %v1690, 1.442695
        %v1786 = vpow.pop %v1785
        %v1787 = vmul.f32 %v1691, 1.442695
        %v1788 = vpow.pop %v1787
        %v1789 = vmul.f32 %v1692, 1.442695
        %v1790 = vpow.pop %v1789
        %v1791 = vmul.f32 %v1693, 1.442695
        %v1792 = vpow.pop %v1791
        %v1793 = vmul.f32 %v1694, 1.442695
        %v1794 = vpow.pop %v1793
        %v1795 = vmul.f32 %v1695, 1.442695
        %v1796 = vpow.pop %v1795
        %v1797 = vmul.f32 %v1696, 1.442695
        %v1798 = vpow.pop %v1797
        %v1799 = vmul.f32 %v1697, 1.442695
        %v1800 = vpow.pop %v1799
        %v1801 = vmul.f32 %v1698, 1.442695
        %v1802 = vpow.pop %v1801
        %v1803 = vmul.f32 %v1699, 1.442695
        %v1804 = vpow.pop %v1803
        %v1805 = vmul.f32 %v1700, 1.442695
        %v1806 = vpow.pop %v1805
        %v1807 = vmul.f32 %v1701, 1.442695
        %v1808 = vpow.pop %v1807
        %v1809 = vmul.f32 %v1702, 1.442695
        %v1810 = vpow.pop %v1809
        %v1811 = vmul.f32 %v1703, 1.442695
        %v1812 = vpow.pop %v1811
        %v1813 = vmul.f32 %v1704, 1.442695
        %v1814 = vpow.pop %v1813
        %v1815 = vmul.f32 %v1705, 1.442695
        %v1816 = vpow.pop %v1815
        %v1817 = vmul.f32 %v1706, 1.442695
        %v1818 = vpow.pop %v1817
        %v1819 = vmul.f32 %v1707, 1.442695
        %v1820 = vpow.pop %v1819
        %v1821 = vmul.f32 %v1708, 1.442695
        %v1822 = vpow.pop %v1821
        %v1823 = vmul.f32 %v1709, 1.442695
        %v1824 = vpow.pop %v1823
        %v1825 = vmul.f32 %v1710, 1.442695
        %v1826 = vpow.pop %v1825
        %v1827 = vmul.f32 %v1711, 1.442695
        %v1828 = vpow.pop %v1827
        %v1829 = vmul.f32 %v1712, 1.442695
        %v1830 = vpow.pop %v1829
        %v1831 = vmul.f32 %v1713, 1.442695
        %v1832 = vpow.pop %v1831
        %v1833 = vmul.f32 %v1714, 1.442695
        %v1834 = vpow.pop %v1833
        %v1835 = vmul.f32 %v1715, 1.442695
        %v1836 = vpow.pop %v1835
        %v1837 = vmul.f32 %v1716, 1.442695
        %v1838 = vpow.pop %v1837
        %v1839 = vmul.f32 %v1717, 1.442695
        %v1840 = vpow.pop %v1839
        %v1841 = vmul.f32 %v1718, 1.442695
        %v1842 = vpow.pop %v1841
        %v1843 = vmul.f32 %v1719, 1.442695
        %v1844 = vpow.pop %v1843
        %v1845 = vmul.f32 %v1720, 1.442695
        %v1846 = vpow.pop %v1845
        %v1847 = vmul.f32 %v1721, 1.442695
        %v1848 = vpow.pop %v1847
        %v1849 = vmul.f32 %v1722, 1.442695
        %v1850 = vpow.pop %v1849
        %1851 = vadd.xlane.f32.xlu0 %v1724
        %v1852 = vpop.xlane.xlu0 %1851
        %1853 = vadd.xlane.f32.xlu0 %v1726
        %v1854 = vpop.xlane.xlu0 %1853
        %1855 = vadd.xlane.f32.xlu0 %v1728
        %v1856 = vpop.xlane.xlu0 %1855
        %1857 = vadd.xlane.f32.xlu0 %v1730
        %v1858 = vpop.xlane.xlu0 %1857
        %1859 = vadd.xlane.f32.xlu0 %v1732
        %v1860 = vpop.xlane.xlu0 %1859
        %1861 = vadd.xlane.f32.xlu0 %v1734
        %v1862 = vpop.xlane.xlu0 %1861
        %1863 = vadd.xlane.f32.xlu0 %v1736
        %v1864 = vpop.xlane.xlu0 %1863
        %1865 = vadd.xlane.f32.xlu0 %v1738
        %v1866 = vpop.xlane.xlu0 %1865
        %1867 = vadd.xlane.f32.xlu0 %v1740
        %v1868 = vpop.xlane.xlu0 %1867
        %1869 = vadd.xlane.f32.xlu0 %v1742
        %v1870 = vpop.xlane.xlu0 %1869
        %1871 = vadd.xlane.f32.xlu0 %v1744
        %v1872 = vpop.xlane.xlu0 %1871
        %1873 = vadd.xlane.f32.xlu0 %v1746
        %v1874 = vpop.xlane.xlu0 %1873
        %1875 = vadd.xlane.f32.xlu0 %v1748
        %v1876 = vpop.xlane.xlu0 %1875
        %1877 = vadd.xlane.f32.xlu0 %v1750
        %v1878 = vpop.xlane.xlu0 %1877
        %1879 = vadd.xlane.f32.xlu0 %v1752
        %v1880 = vpop.xlane.xlu0 %1879
        %1881 = vadd.xlane.f32.xlu0 %v1754
        %v1882 = vpop.xlane.xlu0 %1881
        %1883 = vadd.xlane.f32.xlu0 %v1756
        %v1884 = vpop.xlane.xlu0 %1883
        %1885 = vadd.xlane.f32.xlu0 %v1758
        %v1886 = vpop.xlane.xlu0 %1885
        %1887 = vadd.xlane.f32.xlu0 %v1760
        %v1888 = vpop.xlane.xlu0 %1887
        %1889 = vadd.xlane.f32.xlu0 %v1762
        %v1890 = vpop.xlane.xlu0 %1889
        %1891 = vadd.xlane.f32.xlu0 %v1764
        %v1892 = vpop.xlane.xlu0 %1891
        %1893 = vadd.xlane.f32.xlu0 %v1766
        %v1894 = vpop.xlane.xlu0 %1893
        %1895 = vadd.xlane.f32.xlu0 %v1768
        %v1896 = vpop.xlane.xlu0 %1895
        %1897 = vadd.xlane.f32.xlu0 %v1770
        %v1898 = vpop.xlane.xlu0 %1897
        %1899 = vadd.xlane.f32.xlu0 %v1772
        %v1900 = vpop.xlane.xlu0 %1899
        %1901 = vadd.xlane.f32.xlu0 %v1774
        %v1902 = vpop.xlane.xlu0 %1901
        %1903 = vadd.xlane.f32.xlu0 %v1776
        %v1904 = vpop.xlane.xlu0 %1903
        %1905 = vadd.xlane.f32.xlu0 %v1778
        %v1906 = vpop.xlane.xlu0 %1905
        %1907 = vadd.xlane.f32.xlu0 %v1780
        %v1908 = vpop.xlane.xlu0 %1907
        %1909 = vadd.xlane.f32.xlu0 %v1782
        %v1910 = vpop.xlane.xlu0 %1909
        %1911 = vadd.xlane.f32.xlu0 %v1784
        %v1912 = vpop.xlane.xlu0 %1911
        %1913 = vadd.xlane.f32.xlu0 %v1786
        %v1914 = vpop.xlane.xlu0 %1913
        %1915 = vadd.xlane.f32.xlu0 %v1788
        %v1916 = vpop.xlane.xlu0 %1915
        %1917 = vadd.xlane.f32.xlu0 %v1790
        %v1918 = vpop.xlane.xlu0 %1917
        %1919 = vadd.xlane.f32.xlu0 %v1792
        %v1920 = vpop.xlane.xlu0 %1919
        %1921 = vadd.xlane.f32.xlu0 %v1794
        %v1922 = vpop.xlane.xlu0 %1921
        %1923 = vadd.xlane.f32.xlu0 %v1796
        %v1924 = vpop.xlane.xlu0 %1923
        %1925 = vadd.xlane.f32.xlu0 %v1798
        %v1926 = vpop.xlane.xlu0 %1925
        %1927 = vadd.xlane.f32.xlu0 %v1800
        %v1928 = vpop.xlane.xlu0 %1927
        %1929 = vadd.xlane.f32.xlu0 %v1802
        %v1930 = vpop.xlane.xlu0 %1929
        %1931 = vadd.xlane.f32.xlu0 %v1804
        %v1932 = vpop.xlane.xlu0 %1931
        %1933 = vadd.xlane.f32.xlu0 %v1806
        %v1934 = vpop.xlane.xlu0 %1933
        %1935 = vadd.xlane.f32.xlu0 %v1808
        %v1936 = vpop.xlane.xlu0 %1935
        %1937 = vadd.xlane.f32.xlu0 %v1810
        %v1938 = vpop.xlane.xlu0 %1937
        %1939 = vadd.xlane.f32.xlu0 %v1812
        %v1940 = vpop.xlane.xlu0 %1939
        %1941 = vadd.xlane.f32.xlu0 %v1814
        %v1942 = vpop.xlane.xlu0 %1941
        %1943 = vadd.xlane.f32.xlu0 %v1816
        %v1944 = vpop.xlane.xlu0 %1943
        %1945 = vadd.xlane.f32.xlu0 %v1818
        %v1946 = vpop.xlane.xlu0 %1945
        %1947 = vadd.xlane.f32.xlu0 %v1820
        %v1948 = vpop.xlane.xlu0 %1947
        %1949 = vadd.xlane.f32.xlu0 %v1822
        %v1950 = vpop.xlane.xlu0 %1949
        %1951 = vadd.xlane.f32.xlu0 %v1824
        %v1952 = vpop.xlane.xlu0 %1951
        %1953 = vadd.xlane.f32.xlu0 %v1826
        %v1954 = vpop.xlane.xlu0 %1953
        %1955 = vadd.xlane.f32.xlu0 %v1828
        %v1956 = vpop.xlane.xlu0 %1955
        %1957 = vadd.xlane.f32.xlu0 %v1830
        %v1958 = vpop.xlane.xlu0 %1957
        %1959 = vadd.xlane.f32.xlu0 %v1832
        %v1960 = vpop.xlane.xlu0 %1959
        %1961 = vadd.xlane.f32.xlu0 %v1834
        %v1962 = vpop.xlane.xlu0 %1961
        %1963 = vadd.xlane.f32.xlu0 %v1836
        %v1964 = vpop.xlane.xlu0 %1963
        %1965 = vadd.xlane.f32.xlu0 %v1838
        %v1966 = vpop.xlane.xlu0 %1965
        %1967 = vadd.xlane.f32.xlu0 %v1840
        %v1968 = vpop.xlane.xlu0 %1967
        %1969 = vadd.xlane.f32.xlu0 %v1842
        %v1970 = vpop.xlane.xlu0 %1969
        %1971 = vadd.xlane.f32.xlu0 %v1844
        %v1972 = vpop.xlane.xlu0 %1971
        %1973 = vadd.xlane.f32.xlu0 %v1846
        %v1974 = vpop.xlane.xlu0 %1973
        %1975 = vadd.xlane.f32.xlu0 %v1848
        %v1976 = vpop.xlane.xlu0 %1975
        %1977 = vadd.xlane.f32.xlu0 %v1850
        %v1978 = vpop.xlane.xlu0 %1977
        %v1979 = vrcp.pop %v1852
        %v1980 = vrcp.pop %v1854
        %v1981 = vrcp.pop %v1856
        %v1982 = vrcp.pop %v1858
        %v1983 = vrcp.pop %v1860
        %v1984 = vrcp.pop %v1862
        %v1985 = vrcp.pop %v1864
        %v1986 = vrcp.pop %v1866
        %v1987 = vrcp.pop %v1868
        %v1988 = vrcp.pop %v1870
        %v1989 = vrcp.pop %v1872
        %v1990 = vrcp.pop %v1874
        %v1991 = vrcp.pop %v1876
        %v1992 = vrcp.pop %v1878
        %v1993 = vrcp.pop %v1880
        %v1994 = vrcp.pop %v1882
        %v1995 = vrcp.pop %v1884
        %v1996 = vrcp.pop %v1886
        %v1997 = vrcp.pop %v1888
        %v1998 = vrcp.pop %v1890
        %v1999 = vrcp.pop %v1892
        %v2000 = vrcp.pop %v1894
        %v2001 = vrcp.pop %v1896
        %v2002 = vrcp.pop %v1898
        %v2003 = vrcp.pop %v1900
        %v2004 = vrcp.pop %v1902
        %v2005 = vrcp.pop %v1904
        %v2006 = vrcp.pop %v1906
        %v2007 = vrcp.pop %v1908
        %v2008 = vrcp.pop %v1910
        %v2009 = vrcp.pop %v1912
        %v2010 = vrcp.pop %v1914
        %v2011 = vrcp.pop %v1916
        %v2012 = vrcp.pop %v1918
        %v2013 = vrcp.pop %v1920
        %v2014 = vrcp.pop %v1922
        %v2015 = vrcp.pop %v1924
        %v2016 = vrcp.pop %v1926
        %v2017 = vrcp.pop %v1928
        %v2018 = vrcp.pop %v1930
        %v2019 = vrcp.pop %v1932
        %v2020 = vrcp.pop %v1934
        %v2021 = vrcp.pop %v1936
        %v2022 = vrcp.pop %v1938
        %v2023 = vrcp.pop %v1940
        %v2024 = vrcp.pop %v1942
        %v2025 = vrcp.pop %v1944
        %v2026 = vrcp.pop %v1946
        %v2027 = vrcp.pop %v1948
        %v2028 = vrcp.pop %v1950
        %v2029 = vrcp.pop %v1952
        %v2030 = vrcp.pop %v1954
        %v2031 = vrcp.pop %v1956
        %v2032 = vrcp.pop %v1958
        %v2033 = vrcp.pop %v1960
        %v2034 = vrcp.pop %v1962
        %v2035 = vrcp.pop %v1964
        %v2036 = vrcp.pop %v1966
        %v2037 = vrcp.pop %v1968
        %v2038 = vrcp.pop %v1970
        %v2039 = vrcp.pop %v1972
        %v2040 = vrcp.pop %v1974
        %v2041 = vrcp.pop %v1976
        %v2042 = vrcp.pop %v1978
        %v2043 = vmul.f32 %v1724, %v1979
        %v2044 = vmul.f32 %v1726, %v1980
        %v2045 = vmul.f32 %v1728, %v1981
        %v2046 = vmul.f32 %v1730, %v1982
        %v2047 = vmul.f32 %v1732, %v1983
        %v2048 = vmul.f32 %v1734, %v1984
        %v2049 = vmul.f32 %v1736, %v1985
        %v2050 = vmul.f32 %v1738, %v1986
        %v2051 = vmul.f32 %v1740, %v1987
        %v2052 = vmul.f32 %v1742, %v1988
        %v2053 = vmul.f32 %v1744, %v1989
        %v2054 = vmul.f32 %v1746, %v1990
        %v2055 = vmul.f32 %v1748, %v1991
        %v2056 = vmul.f32 %v1750, %v1992
        %v2057 = vmul.f32 %v1752, %v1993
        %v2058 = vmul.f32 %v1754, %v1994
        %v2059 = vmul.f32 %v1756, %v1995
        %v2060 = vmul.f32 %v1758, %v1996
        %v2061 = vmul.f32 %v1760, %v1997
        %v2062 = vmul.f32 %v1762, %v1998
        %v2063 = vmul.f32 %v1764, %v1999
        %v2064 = vmul.f32 %v1766, %v2000
        %v2065 = vmul.f32 %v1768, %v2001
        %v2066 = vmul.f32 %v1770, %v2002
        %v2067 = vmul.f32 %v1772, %v2003
        %v2068 = vmul.f32 %v1774, %v2004
        %v2069 = vmul.f32 %v1776, %v2005
        %v2070 = vmul.f32 %v1778, %v2006
        %v2071 = vmul.f32 %v1780, %v2007
        %v2072 = vmul.f32 %v1782, %v2008
        %v2073 = vmul.f32 %v1784, %v2009
        %v2074 = vmul.f32 %v1786, %v2010
        %v2075 = vmul.f32 %v1788, %v2011
        %v2076 = vmul.f32 %v1790, %v2012
        %v2077 = vmul.f32 %v1792, %v2013
        %v2078 = vmul.f32 %v1794, %v2014
        %v2079 = vmul.f32 %v1796, %v2015
        %v2080 = vmul.f32 %v1798, %v2016
        %v2081 = vmul.f32 %v1800, %v2017
        %v2082 = vmul.f32 %v1802, %v2018
        %v2083 = vmul.f32 %v1804, %v2019
        %v2084 = vmul.f32 %v1806, %v2020
        %v2085 = vmul.f32 %v1808, %v2021
        %v2086 = vmul.f32 %v1810, %v2022
        %v2087 = vmul.f32 %v1812, %v2023
        %v2088 = vmul.f32 %v1814, %v2024
        %v2089 = vmul.f32 %v1816, %v2025
        %v2090 = vmul.f32 %v1818, %v2026
        %v2091 = vmul.f32 %v1820, %v2027
        %v2092 = vmul.f32 %v1822, %v2028
        %v2093 = vmul.f32 %v1824, %v2029
        %v2094 = vmul.f32 %v1826, %v2030
        %v2095 = vmul.f32 %v1828, %v2031
        %v2096 = vmul.f32 %v1830, %v2032
        %v2097 = vmul.f32 %v1832, %v2033
        %v2098 = vmul.f32 %v1834, %v2034
        %v2099 = vmul.f32 %v1836, %v2035
        %v2100 = vmul.f32 %v1838, %v2036
        %v2101 = vmul.f32 %v1840, %v2037
        %v2102 = vmul.f32 %v1842, %v2038
        %v2103 = vmul.f32 %v1844, %v2039
        %v2104 = vmul.f32 %v1846, %v2040
        %v2105 = vmul.f32 %v1848, %v2041
        %v2106 = vmul.f32 %v1850, %v2042
        %2107 = vmatprep.subr.mxu0 0.0
        %2108 = vmatpush1.msra.mxu0 %v438
        %2109 = vmatprep.subr.mxu0 0.0
        %2110 = vmatpush1.msra.mxu0 %v439
        %2111 = vmatprep.subr.mxu0 0.0
        %2112 = vmatpush1.msra.mxu0 %v440
        %2113 = vmatprep.subr.mxu0 0.0
        %2114 = vmatpush1.msra.mxu0 %v441
        %2115 = vmatprep.subr.mxu0 0.0
        %2116 = vmatpush1.msra.mxu0 %v442
        %2117 = vmatprep.subr.mxu0 0.0
        %2118 = vmatpush1.msra.mxu0 %v443
        %2119 = vmatprep.subr.mxu0 0.0
        %2120 = vmatpush1.msra.mxu0 %v444
        %2121 = vmatprep.subr.mxu0 0.0
        %2122 = vmatpush1.msra.mxu0 %v445
        %2123 = vmatprep.subr.mxu0 0.0
        %2124 = vmatpush1.msra.mxu0 %v446
        %2125 = vmatprep.subr.mxu0 0.0
        %2126 = vmatpush1.msra.mxu0 %v447
        %2127 = vmatprep.subr.mxu0 0.0
        %2128 = vmatpush1.msra.mxu0 %v448
        %2129 = vmatprep.subr.mxu0 0.0
        %2130 = vmatpush1.msra.mxu0 %v449
        %2131 = vmatprep.subr.mxu0 0.0
        %2132 = vmatpush1.msra.mxu0 %v450
        %2133 = vmatprep.subr.mxu0 0.0
        %2134 = vmatpush1.msra.mxu0 %v451
        %2135 = vmatprep.subr.mxu0 0.0
        %2136 = vmatpush1.msra.mxu0 %v452
        %2137 = vmatprep.subr.mxu0 0.0
        %2138 = vmatpush1.msra.mxu0 %v453
        %2139 = vmatprep.subr.mxu0 0.0
        %2140 = vmatpush1.msra.mxu0 0.0
        %2141 = vmatprep.subr.mxu0 0.0
        %2142 = vmatpush1.msra.mxu0 0.0
        %2143 = vmatprep.subr.mxu0 0.0
        %2144 = vmatpush1.msra.mxu0 0.0
        %2145 = vmatprep.subr.mxu0 0.0
        %2146 = vmatpush1.msra.mxu0 0.0
        %2147 = vmatprep.subr.mxu0 0.0
        %2148 = vmatpush1.msra.mxu0 0.0
        %2149 = vmatprep.subr.mxu0 0.0
        %2150 = vmatpush1.msra.mxu0 0.0
        %2151 = vmatprep.subr.mxu0 0.0
        %2152 = vmatpush1.msra.mxu0 0.0
        %2153 = vmatprep.subr.mxu0 0.0
        %2154 = vmatpush1.msra.mxu0 0.0
        %2155 = vmatprep.subr.mxu0 0.0
        %2156 = vmatpush1.msra.mxu0 0.0
        %2157 = vmatprep.subr.mxu0 0.0
        %2158 = vmatpush1.msra.mxu0 0.0
        %2159 = vmatprep.subr.mxu0 0.0
        %2160 = vmatpush1.msra.mxu0 0.0
        %2161 = vmatprep.subr.mxu0 0.0
        %2162 = vmatpush1.msra.mxu0 0.0
        %2163 = vmatprep.subr.mxu0 0.0
        %2164 = vmatpush1.msra.mxu0 0.0
        %2165 = vmatprep.subr.mxu0 0.0
        %2166 = vmatpush1.msra.mxu0 0.0
        %2167 = vmatprep.subr.mxu0 0.0
        %2168 = vmatpush1.msra.mxu0 0.0
        %2169 = vmatprep.subr.mxu0 0.0
        %2170 = vmatpush1.msra.mxu0 0.0
        %2171 = vmatprep.mubr.f32.mxu0 0.0
        %2172 = vmatmul.mubr.f32.gmra.mrb[0].mxu0 %v2043
        %v2173 = vpop.f32.mrb[0].mxu0
        %v2174 = vadd.f32 0.0, %v2173
        %v2175 = vpop.f32.mrb[0].mxu0
        %2176 = vmatprep.mubr.f32.mxu0 0.0
        %2177 = vmatmul.mubr.f32.gmra.mrb[0].mxu0 %v2044
        %v2178 = vpop.f32.mrb[0].mxu0
        %v2179 = vadd.f32 0.0, %v2178
        %v2180 = vpop.f32.mrb[0].mxu0
        %2181 = vmatprep.mubr.f32.mxu0 0.0
        %2182 = vmatmul.mubr.f32.gmra.mrb[0].mxu0 %v2045
        %v2183 = vpop.f32.mrb[0].mxu0
        %v2184 = vadd.f32 0.0, %v2183
        %v2185 = vpop.f32.mrb[0].mxu0
        %2186 = vmatprep.mubr.f32.mxu0 0.0
        %2187 = vmatmul.mubr.f32.gmra.mrb[0].mxu0 %v2046
        %v2188 = vpop.f32.mrb[0].mxu0
        %v2189 = vadd.f32 0.0, %v2188
        %v2190 = vpop.f32.mrb[0].mxu0
        %2191 = vmatprep.mubr.f32.mxu0 0.0
        %2192 = vmatmul.mubr.f32.gmra.mrb[0].mxu0 %v2047
        %v2193 = vpop.f32.mrb[0].mxu0
        %v2194 = vadd.f32 0.0, %v2193
        %v2195 = vpop.f32.mrb[0].mxu0
        %2196 = vmatprep.mubr.f32.mxu0 0.0
        %2197 = vmatmul.mubr.f32.gmra.mrb[0].mxu0 %v2048
        %v2198 = vpop.f32.mrb[0].mxu0
        %v2199 = vadd.f32 0.0, %v2198
        %v2200 = vpop.f32.mrb[0].mxu0
        %2201 = vmatprep.mubr.f32.mxu0 0.0
        %2202 = vmatmul.mubr.f32.gmra.mrb[0].mxu0 %v2049
        %v2203 = vpop.f32.mrb[0].mxu0
        %v2204 = vadd.f32 0.0, %v2203
        %v2205 = vpop.f32.mrb[0].mxu0
        %2206 = vmatprep.mubr.f32.mxu0 0.0
        %2207 = vmatmul.mubr.f32.gmra.mrb[0].mxu0 %v2050
        %v2208 = vpop.f32.mrb[0].mxu0
        %v2209 = vadd.f32 0.0, %v2208
        %v2210 = vpop.f32.mrb[0].mxu0
        %2211 = vmatprep.mubr.f32.mxu0 0.0
        %2212 = vmatmul.mubr.f32.gmra.mrb[0].mxu0 %v2051
        %v2213 = vpop.f32.mrb[0].mxu0
        %v2214 = vadd.f32 0.0, %v2213
        %v2215 = vpop.f32.mrb[0].mxu0
        %2216 = vmatprep.mubr.f32.mxu0 0.0
        %2217 = vmatmul.mubr.f32.gmra.mrb[0].mxu0 %v2052
        %v2218 = vpop.f32.mrb[0].mxu0
        %v2219 = vadd.f32 0.0, %v2218
        %v2220 = vpop.f32.mrb[0].mxu0
        %2221 = vmatprep.mubr.f32.mxu0 0.0
        %2222 = vmatmul.mubr.f32.gmra.mrb[0].mxu0 %v2053
        %v2223 = vpop.f32.mrb[0].mxu0
        %v2224 = vadd.f32 0.0, %v2223
        %v2225 = vpop.f32.mrb[0].mxu0
        %2226 = vmatprep.mubr.f32.mxu0 0.0
        %2227 = vmatmul.mubr.f32.gmra.mrb[0].mxu0 %v2054
        %v2228 = vpop.f32.mrb[0].mxu0
        %v2229 = vadd.f32 0.0, %v2228
        %v2230 = vpop.f32.mrb[0].mxu0
        %2231 = vmatprep.mubr.f32.mxu0 0.0
        %2232 = vmatmul.mubr.f32.gmra.mrb[0].mxu0 %v2055
        %v2233 = vpop.f32.mrb[0].mxu0
        %v2234 = vadd.f32 0.0, %v2233
        %v2235 = vpop.f32.mrb[0].mxu0
        %2236 = vmatprep.mubr.f32.mxu0 0.0
        %2237 = vmatmul.mubr.f32.gmra.mrb[0].mxu0 %v2056
        %v2238 = vpop.f32.mrb[0].mxu0
        %v2239 = vadd.f32 0.0, %v2238
        %v2240 = vpop.f32.mrb[0].mxu0
        %2241 = vmatprep.mubr.f32.mxu0 0.0
        %2242 = vmatmul.mubr.f32.gmra.mrb[0].mxu0 %v2057
        %v2243 = vpop.f32.mrb[0].mxu0
        %v2244 = vadd.f32 0.0, %v2243
        %v2245 = vpop.f32.mrb[0].mxu0
        %2246 = vmatprep.mubr.f32.mxu0 0.0
        %2247 = vmatmul.mubr.f32.gmra.mrb[0].mxu0 %v2058
        %v2248 = vpop.f32.mrb[0].mxu0
        %v2249 = vadd.f32 0.0, %v2248
        %v2250 = vpop.f32.mrb[0].mxu0
        %2251 = vdwg.mxu0
        %2252 = vmatprep.subr.mxu0 0.0
        %2253 = vmatpush1.msra.mxu0 %v454
        %2254 = vmatprep.subr.mxu0 0.0
        %2255 = vmatpush1.msra.mxu0 %v455
        %2256 = vmatprep.subr.mxu0 0.0
        %2257 = vmatpush1.msra.mxu0 %v456
        %2258 = vmatprep.subr.mxu0 0.0
        %2259 = vmatpush1.msra.mxu0 %v457
        %2260 = vmatprep.subr.mxu0 0.0
        %2261 = vmatpush1.msra.mxu0 %v458
        %2262 = vmatprep.subr.mxu0 0.0
        %2263 = vmatpush1.msra.mxu0 %v459
        %2264 = vmatprep.subr.mxu0 0.0
        %2265 = vmatpush1.msra.mxu0 %v460
        %2266 = vmatprep.subr.mxu0 0.0
        %2267 = vmatpush1.msra.mxu0 %v461
        %2268 = vmatprep.subr.mxu0 0.0
        %2269 = vmatpush1.msra.mxu0 %v462
        %2270 = vmatprep.subr.mxu0 0.0
        %2271 = vmatpush1.msra.mxu0 %v463
        %2272 = vmatprep.subr.mxu0 0.0
        %2273 = vmatpush1.msra.mxu0 %v464
        %2274 = vmatprep.subr.mxu0 0.0
        %2275 = vmatpush1.msra.mxu0 %v465
        %2276 = vmatprep.subr.mxu0 0.0
        %2277 = vmatpush1.msra.mxu0 %v466
        %2278 = vmatprep.subr.mxu0 0.0
        %2279 = vmatpush1.msra.mxu0 %v467
        %2280 = vmatprep.subr.mxu0 0.0
        %2281 = vmatpush1.msra.mxu0 %v468
        %2282 = vmatprep.subr.mxu0 0.0
        %2283 = vmatpush1.msra.mxu0 %v469
        %2284 = vmatprep.subr.mxu0 0.0
        %2285 = vmatpush1.msra.mxu0 0.0
        %2286 = vmatprep.subr.mxu0 0.0
        %2287 = vmatpush1.msra.mxu0 0.0
        %2288 = vmatprep.subr.mxu0 0.0
        %2289 = vmatpush1.msra.mxu0 0.0
        %2290 = vmatprep.subr.mxu0 0.0
        %2291 = vmatpush1.msra.mxu0 0.0
        %2292 = vmatprep.subr.mxu0 0.0
        %2293 = vmatpush1.msra.mxu0 0.0
        %2294 = vmatprep.subr.mxu0 0.0
        %2295 = vmatpush1.msra.mxu0 0.0
        %2296 = vmatprep.subr.mxu0 0.0
        %2297 = vmatpush1.msra.mxu0 0.0
        %2298 = vmatprep.subr.mxu0 0.0
        %2299 = vmatpush1.msra.mxu0 0.0
        %2300 = vmatprep.subr.mxu0 0.0
        %2301 = vmatpush1.msra.mxu0 0.0
        %2302 = vmatprep.subr.mxu0 0.0
        %2303 = vmatpush1.msra.mxu0 0.0
        %2304 = vmatprep.subr.mxu0 0.0
        %2305 = vmatpush1.msra.mxu0 0.0
        %2306 = vmatprep.subr.mxu0 0.0
        %2307 = vmatpush1.msra.mxu0 0.0
        %2308 = vmatprep.subr.mxu0 0.0
        %2309 = vmatpush1.msra.mxu0 0.0
        %2310 = vmatprep.subr.mxu0 0.0
        %2311 = vmatpush1.msra.mxu0 0.0
        %2312 = vmatprep.subr.mxu0 0.0
        %2313 = vmatpush1.msra.mxu0 0.0
        %2314 = vmatprep.subr.mxu0 0.0
        %2315 = vmatpush1.msra.mxu0 0.0
        %2316 = vmatprep.mubr.f32.mxu0 0.0
        %2317 = vmatmul.mubr.f32.gmra.mrb[0].mxu0 %v2059
        %v2318 = vpop.f32.mrb[0].mxu0
        %v2319 = vadd.f32 0.0, %v2318
        %v2320 = vpop.f32.mrb[0].mxu0
        %2321 = vmatprep.mubr.f32.mxu0 0.0
        %2322 = vmatmul.mubr.f32.gmra.mrb[0].mxu0 %v2060
        %v2323 = vpop.f32.mrb[0].mxu0
        %v2324 = vadd.f32 0.0, %v2323
        %v2325 = vpop.f32.mrb[0].mxu0
        %2326 = vmatprep.mubr.f32.mxu0 0.0
        %2327 = vmatmul.mubr.f32.gmra.mrb[0].mxu0 %v2061
        %v2328 = vpop.f32.mrb[0].mxu0
        %v2329 = vadd.f32 0.0, %v2328
        %v2330 = vpop.f32.mrb[0].mxu0
        %2331 = vmatprep.mubr.f32.mxu0 0.0
        %2332 = vmatmul.mubr.f32.gmra.mrb[0].mxu0 %v2062
        %v2333 = vpop.f32.mrb[0].mxu0
        %v2334 = vadd.f32 0.0, %v2333
        %v2335 = vpop.f32.mrb[0].mxu0
        %2336 = vmatprep.mubr.f32.mxu0 0.0
        %2337 = vmatmul.mubr.f32.gmra.mrb[0].mxu0 %v2063
        %v2338 = vpop.f32.mrb[0].mxu0
        %v2339 = vadd.f32 0.0, %v2338
        %v2340 = vpop.f32.mrb[0].mxu0
        %2341 = vmatprep.mubr.f32.mxu0 0.0
        %2342 = vmatmul.mubr.f32.gmra.mrb[0].mxu0 %v2064
        %v2343 = vpop.f32.mrb[0].mxu0
        %v2344 = vadd.f32 0.0, %v2343
        %v2345 = vpop.f32.mrb[0].mxu0
        %2346 = vmatprep.mubr.f32.mxu0 0.0
        %2347 = vmatmul.mubr.f32.gmra.mrb[0].mxu0 %v2065
        %v2348 = vpop.f32.mrb[0].mxu0
        %v2349 = vadd.f32 0.0, %v2348
        %v2350 = vpop.f32.mrb[0].mxu0
        %2351 = vmatprep.mubr.f32.mxu0 0.0
        %2352 = vmatmul.mubr.f32.gmra.mrb[0].mxu0 %v2066
        %v2353 = vpop.f32.mrb[0].mxu0
        %v2354 = vadd.f32 0.0, %v2353
        %v2355 = vpop.f32.mrb[0].mxu0
        %2356 = vmatprep.mubr.f32.mxu0 0.0
        %2357 = vmatmul.mubr.f32.gmra.mrb[0].mxu0 %v2067
        %v2358 = vpop.f32.mrb[0].mxu0
        %v2359 = vadd.f32 0.0, %v2358
        %v2360 = vpop.f32.mrb[0].mxu0
        %2361 = vmatprep.mubr.f32.mxu0 0.0
        %2362 = vmatmul.mubr.f32.gmra.mrb[0].mxu0 %v2068
        %v2363 = vpop.f32.mrb[0].mxu0
        %v2364 = vadd.f32 0.0, %v2363
        %v2365 = vpop.f32.mrb[0].mxu0
        %2366 = vmatprep.mubr.f32.mxu0 0.0
        %2367 = vmatmul.mubr.f32.gmra.mrb[0].mxu0 %v2069
        %v2368 = vpop.f32.mrb[0].mxu0
        %v2369 = vadd.f32 0.0, %v2368
        %v2370 = vpop.f32.mrb[0].mxu0
        %2371 = vmatprep.mubr.f32.mxu0 0.0
        %2372 = vmatmul.mubr.f32.gmra.mrb[0].mxu0 %v2070
        %v2373 = vpop.f32.mrb[0].mxu0
        %v2374 = vadd.f32 0.0, %v2373
        %v2375 = vpop.f32.mrb[0].mxu0
        %2376 = vmatprep.mubr.f32.mxu0 0.0
        %2377 = vmatmul.mubr.f32.gmra.mrb[0].mxu0 %v2071
        %v2378 = vpop.f32.mrb[0].mxu0
        %v2379 = vadd.f32 0.0, %v2378
        %v2380 = vpop.f32.mrb[0].mxu0
        %2381 = vmatprep.mubr.f32.mxu0 0.0
        %2382 = vmatmul.mubr.f32.gmra.mrb[0].mxu0 %v2072
        %v2383 = vpop.f32.mrb[0].mxu0
        %v2384 = vadd.f32 0.0, %v2383
        %v2385 = vpop.f32.mrb[0].mxu0
        %2386 = vmatprep.mubr.f32.mxu0 0.0
        %2387 = vmatmul.mubr.f32.gmra.mrb[0].mxu0 %v2073
        %v2388 = vpop.f32.mrb[0].mxu0
        %v2389 = vadd.f32 0.0, %v2388
        %v2390 = vpop.f32.mrb[0].mxu0
        %2391 = vmatprep.mubr.f32.mxu0 0.0
        %2392 = vmatmul.mubr.f32.gmra.mrb[0].mxu0 %v2074
        %v2393 = vpop.f32.mrb[0].mxu0
        %v2394 = vadd.f32 0.0, %v2393
        %v2395 = vpop.f32.mrb[0].mxu0
        %2396 = vdwg.mxu0
        %2397 = vmatprep.subr.mxu0 0.0
        %2398 = vmatpush1.msra.mxu0 %v470
        %2399 = vmatprep.subr.mxu0 0.0
        %2400 = vmatpush1.msra.mxu0 %v471
        %2401 = vmatprep.subr.mxu0 0.0
        %2402 = vmatpush1.msra.mxu0 %v472
        %2403 = vmatprep.subr.mxu0 0.0
        %2404 = vmatpush1.msra.mxu0 %v473
        %2405 = vmatprep.subr.mxu0 0.0
        %2406 = vmatpush1.msra.mxu0 %v474
        %2407 = vmatprep.subr.mxu0 0.0
        %2408 = vmatpush1.msra.mxu0 %v475
        %2409 = vmatprep.subr.mxu0 0.0
        %2410 = vmatpush1.msra.mxu0 %v476
        %2411 = vmatprep.subr.mxu0 0.0
        %2412 = vmatpush1.msra.mxu0 %v477
        %2413 = vmatprep.subr.mxu0 0.0
        %2414 = vmatpush1.msra.mxu0 %v478
        %2415 = vmatprep.subr.mxu0 0.0
        %2416 = vmatpush1.msra.mxu0 %v479
        %2417 = vmatprep.subr.mxu0 0.0
        %2418 = vmatpush1.msra.mxu0 %v480
        %2419 = vmatprep.subr.mxu0 0.0
        %2420 = vmatpush1.msra.mxu0 %v481
        %2421 = vmatprep.subr.mxu0 0.0
        %2422 = vmatpush1.msra.mxu0 %v482
        %2423 = vmatprep.subr.mxu0 0.0
        %2424 = vmatpush1.msra.mxu0 %v483
        %2425 = vmatprep.subr.mxu0 0.0
        %2426 = vmatpush1.msra.mxu0 %v484
        %2427 = vmatprep.subr.mxu0 0.0
        %2428 = vmatpush1.msra.mxu0 %v485
        %2429 = vmatprep.subr.mxu0 0.0
        %2430 = vmatpush1.msra.mxu0 0.0
        %2431 = vmatprep.subr.mxu0 0.0
        %2432 = vmatpush1.msra.mxu0 0.0
        %2433 = vmatprep.subr.mxu0 0.0
        %2434 = vmatpush1.msra.mxu0 0.0
        %2435 = vmatprep.subr.mxu0 0.0
        %2436 = vmatpush1.msra.mxu0 0.0
        %2437 = vmatprep.subr.mxu0 0.0
        %2438 = vmatpush1.msra.mxu0 0.0
        %2439 = vmatprep.subr.mxu0 0.0
        %2440 = vmatpush1.msra.mxu0 0.0
        %2441 = vmatprep.subr.mxu0 0.0
        %2442 = vmatpush1.msra.mxu0 0.0
        %2443 = vmatprep.subr.mxu0 0.0
        %2444 = vmatpush1.msra.mxu0 0.0
        %2445 = vmatprep.subr.mxu0 0.0
        %2446 = vmatpush1.msra.mxu0 0.0
        %2447 = vmatprep.subr.mxu0 0.0
        %2448 = vmatpush1.msra.mxu0 0.0
        %2449 = vmatprep.subr.mxu0 0.0
        %2450 = vmatpush1.msra.mxu0 0.0
        %2451 = vmatprep.subr.mxu0 0.0
        %2452 = vmatpush1.msra.mxu0 0.0
        %2453 = vmatprep.subr.mxu0 0.0
        %2454 = vmatpush1.msra.mxu0 0.0
        %2455 = vmatprep.subr.mxu0 0.0
        %2456 = vmatpush1.msra.mxu0 0.0
        %2457 = vmatprep.subr.mxu0 0.0
        %2458 = vmatpush1.msra.mxu0 0.0
        %2459 = vmatprep.subr.mxu0 0.0
        %2460 = vmatpush1.msra.mxu0 0.0
        %2461 = vmatprep.mubr.f32.mxu0 0.0
        %2462 = vmatmul.mubr.f32.gmra.mrb[0].mxu0 %v2075
        %v2463 = vpop.f32.mrb[0].mxu0
        %v2464 = vadd.f32 0.0, %v2463
        %v2465 = vpop.f32.mrb[0].mxu0
        %2466 = vmatprep.mubr.f32.mxu0 0.0
        %2467 = vmatmul.mubr.f32.gmra.mrb[0].mxu0 %v2076
        %v2468 = vpop.f32.mrb[0].mxu0
        %v2469 = vadd.f32 0.0, %v2468
        %v2470 = vpop.f32.mrb[0].mxu0
        %2471 = vmatprep.mubr.f32.mxu0 0.0
        %2472 = vmatmul.mubr.f32.gmra.mrb[0].mxu0 %v2077
        %v2473 = vpop.f32.mrb[0].mxu0
        %v2474 = vadd.f32 0.0, %v2473
        %v2475 = vpop.f32.mrb[0].mxu0
        %2476 = vmatprep.mubr.f32.mxu0 0.0
        %2477 = vmatmul.mubr.f32.gmra.mrb[0].mxu0 %v2078
        %v2478 = vpop.f32.mrb[0].mxu0
        %v2479 = vadd.f32 0.0, %v2478
        %v2480 = vpop.f32.mrb[0].mxu0
        %2481 = vmatprep.mubr.f32.mxu0 0.0
        %2482 = vmatmul.mubr.f32.gmra.mrb[0].mxu0 %v2079
        %v2483 = vpop.f32.mrb[0].mxu0
        %v2484 = vadd.f32 0.0, %v2483
        %v2485 = vpop.f32.mrb[0].mxu0
        %2486 = vmatprep.mubr.f32.mxu0 0.0
        %2487 = vmatmul.mubr.f32.gmra.mrb[0].mxu0 %v2080
        %v2488 = vpop.f32.mrb[0].mxu0
        %v2489 = vadd.f32 0.0, %v2488
        %v2490 = vpop.f32.mrb[0].mxu0
        %2491 = vmatprep.mubr.f32.mxu0 0.0
        %2492 = vmatmul.mubr.f32.gmra.mrb[0].mxu0 %v2081
        %v2493 = vpop.f32.mrb[0].mxu0
        %v2494 = vadd.f32 0.0, %v2493
        %v2495 = vpop.f32.mrb[0].mxu0
        %2496 = vmatprep.mubr.f32.mxu0 0.0
        %2497 = vmatmul.mubr.f32.gmra.mrb[0].mxu0 %v2082
        %v2498 = vpop.f32.mrb[0].mxu0
        %v2499 = vadd.f32 0.0, %v2498
        %v2500 = vpop.f32.mrb[0].mxu0
        %2501 = vmatprep.mubr.f32.mxu0 0.0
        %2502 = vmatmul.mubr.f32.gmra.mrb[0].mxu0 %v2083
        %v2503 = vpop.f32.mrb[0].mxu0
        %v2504 = vadd.f32 0.0, %v2503
        %v2505 = vpop.f32.mrb[0].mxu0
        %2506 = vmatprep.mubr.f32.mxu0 0.0
        %2507 = vmatmul.mubr.f32.gmra.mrb[0].mxu0 %v2084
        %v2508 = vpop.f32.mrb[0].mxu0
        %v2509 = vadd.f32 0.0, %v2508
        %v2510 = vpop.f32.mrb[0].mxu0
        %2511 = vmatprep.mubr.f32.mxu0 0.0
        %2512 = vmatmul.mubr.f32.gmra.mrb[0].mxu0 %v2085
        %v2513 = vpop.f32.mrb[0].mxu0
        %v2514 = vadd.f32 0.0, %v2513
        %v2515 = vpop.f32.mrb[0].mxu0
        %2516 = vmatprep.mubr.f32.mxu0 0.0
        %2517 = vmatmul.mubr.f32.gmra.mrb[0].mxu0 %v2086
        %v2518 = vpop.f32.mrb[0].mxu0
        %v2519 = vadd.f32 0.0, %v2518
        %v2520 = vpop.f32.mrb[0].mxu0
        %2521 = vmatprep.mubr.f32.mxu0 0.0
        %2522 = vmatmul.mubr.f32.gmra.mrb[0].mxu0 %v2087
        %v2523 = vpop.f32.mrb[0].mxu0
        %v2524 = vadd.f32 0.0, %v2523
        %v2525 = vpop.f32.mrb[0].mxu0
        %2526 = vmatprep.mubr.f32.mxu0 0.0
        %2527 = vmatmul.mubr.f32.gmra.mrb[0].mxu0 %v2088
        %v2528 = vpop.f32.mrb[0].mxu0
        %v2529 = vadd.f32 0.0, %v2528
        %v2530 = vpop.f32.mrb[0].mxu0
        %2531 = vmatprep.mubr.f32.mxu0 0.0
        %2532 = vmatmul.mubr.f32.gmra.mrb[0].mxu0 %v2089
        %v2533 = vpop.f32.mrb[0].mxu0
        %v2534 = vadd.f32 0.0, %v2533
        %v2535 = vpop.f32.mrb[0].mxu0
        %2536 = vmatprep.mubr.f32.mxu0 0.0
        %2537 = vmatmul.mubr.f32.gmra.mrb[0].mxu0 %v2090
        %v2538 = vpop.f32.mrb[0].mxu0
        %v2539 = vadd.f32 0.0, %v2538
        %v2540 = vpop.f32.mrb[0].mxu0
        %2541 = vdwg.mxu0
        %2542 = vmatprep.subr.mxu0 0.0
        %2543 = vmatpush1.msra.mxu0 %v486
        %2544 = vmatprep.subr.mxu0 0.0
        %2545 = vmatpush1.msra.mxu0 %v487
        %2546 = vmatprep.subr.mxu0 0.0
        %2547 = vmatpush1.msra.mxu0 %v488
        %2548 = vmatprep.subr.mxu0 0.0
        %2549 = vmatpush1.msra.mxu0 %v489
        %2550 = vmatprep.subr.mxu0 0.0
        %2551 = vmatpush1.msra.mxu0 %v490
        %2552 = vmatprep.subr.mxu0 0.0
        %2553 = vmatpush1.msra.mxu0 %v491
        %2554 = vmatprep.subr.mxu0 0.0
        %2555 = vmatpush1.msra.mxu0 %v492
        %2556 = vmatprep.subr.mxu0 0.0
        %2557 = vmatpush1.msra.mxu0 %v493
        %2558 = vmatprep.subr.mxu0 0.0
        %2559 = vmatpush1.msra.mxu0 %v494
        %2560 = vmatprep.subr.mxu0 0.0
        %2561 = vmatpush1.msra.mxu0 %v495
        %2562 = vmatprep.subr.mxu0 0.0
        %2563 = vmatpush1.msra.mxu0 %v496
        %2564 = vmatprep.subr.mxu0 0.0
        %2565 = vmatpush1.msra.mxu0 %v497
        %2566 = vmatprep.subr.mxu0 0.0
        %2567 = vmatpush1.msra.mxu0 %v498
        %2568 = vmatprep.subr.mxu0 0.0
        %2569 = vmatpush1.msra.mxu0 %v499
        %2570 = vmatprep.subr.mxu0 0.0
        %2571 = vmatpush1.msra.mxu0 %v500
        %2572 = vmatprep.subr.mxu0 0.0
        %2573 = vmatpush1.msra.mxu0 %v501
        %2574 = vmatprep.subr.mxu0 0.0
        %2575 = vmatpush1.msra.mxu0 0.0
        %2576 = vmatprep.subr.mxu0 0.0
        %2577 = vmatpush1.msra.mxu0 0.0
        %2578 = vmatprep.subr.mxu0 0.0
        %2579 = vmatpush1.msra.mxu0 0.0
        %2580 = vmatprep.subr.mxu0 0.0
        %2581 = vmatpush1.msra.mxu0 0.0
        %2582 = vmatprep.subr.mxu0 0.0
        %2583 = vmatpush1.msra.mxu0 0.0
        %2584 = vmatprep.subr.mxu0 0.0
        %2585 = vmatpush1.msra.mxu0 0.0
        %2586 = vmatprep.subr.mxu0 0.0
        %2587 = vmatpush1.msra.mxu0 0.0
        %2588 = vmatprep.subr.mxu0 0.0
        %2589 = vmatpush1.msra.mxu0 0.0
        %2590 = vmatprep.subr.mxu0 0.0
        %2591 = vmatpush1.msra.mxu0 0.0
        %2592 = vmatprep.subr.mxu0 0.0
        %2593 = vmatpush1.msra.mxu0 0.0
        %2594 = vmatprep.subr.mxu0 0.0
        %2595 = vmatpush1.msra.mxu0 0.0
        %2596 = vmatprep.subr.mxu0 0.0
        %2597 = vmatpush1.msra.mxu0 0.0
        %2598 = vmatprep.subr.mxu0 0.0
        %2599 = vmatpush1.msra.mxu0 0.0
        %2600 = vmatprep.subr.mxu0 0.0
        %2601 = vmatpush1.msra.mxu0 0.0
        %2602 = vmatprep.subr.mxu0 0.0
        %2603 = vmatpush1.msra.mxu0 0.0
        %2604 = vmatprep.subr.mxu0 0.0
        %2605 = vmatpush1.msra.mxu0 0.0
        %2606 = vmatprep.mubr.f32.mxu0 0.0
        %2607 = vmatmul.mubr.f32.gmra.mrb[0].mxu0 %v2091
        %v2608 = vpop.f32.mrb[0].mxu0
        %v2609 = vadd.f32 0.0, %v2608
        %v2610 = vpop.f32.mrb[0].mxu0
        %2611 = vmatprep.mubr.f32.mxu0 0.0
        %2612 = vmatmul.mubr.f32.gmra.mrb[0].mxu0 %v2092
        %v2613 = vpop.f32.mrb[0].mxu0
        %v2614 = vadd.f32 0.0, %v2613
        %v2615 = vpop.f32.mrb[0].mxu0
        %2616 = vmatprep.mubr.f32.mxu0 0.0
        %2617 = vmatmul.mubr.f32.gmra.mrb[0].mxu0 %v2093
        %v2618 = vpop.f32.mrb[0].mxu0
        %v2619 = vadd.f32 0.0, %v2618
        %v2620 = vpop.f32.mrb[0].mxu0
        %2621 = vmatprep.mubr.f32.mxu0 0.0
        %2622 = vmatmul.mubr.f32.gmra.mrb[0].mxu0 %v2094
        %v2623 = vpop.f32.mrb[0].mxu0
        %v2624 = vadd.f32 0.0, %v2623
        %v2625 = vpop.f32.mrb[0].mxu0
        %2626 = vmatprep.mubr.f32.mxu0 0.0
        %2627 = vmatmul.mubr.f32.gmra.mrb[0].mxu0 %v2095
        %v2628 = vpop.f32.mrb[0].mxu0
        %v2629 = vadd.f32 0.0, %v2628
        %v2630 = vpop.f32.mrb[0].mxu0
        %2631 = vmatprep.mubr.f32.mxu0 0.0
        %2632 = vmatmul.mubr.f32.gmra.mrb[0].mxu0 %v2096
        %v2633 = vpop.f32.mrb[0].mxu0
        %v2634 = vadd.f32 0.0, %v2633
        %v2635 = vpop.f32.mrb[0].mxu0
        %2636 = vmatprep.mubr.f32.mxu0 0.0
        %2637 = vmatmul.mubr.f32.gmra.mrb[0].mxu0 %v2097
        %v2638 = vpop.f32.mrb[0].mxu0
        %v2639 = vadd.f32 0.0, %v2638
        %v2640 = vpop.f32.mrb[0].mxu0
        %2641 = vmatprep.mubr.f32.mxu0 0.0
        %2642 = vmatmul.mubr.f32.gmra.mrb[0].mxu0 %v2098
        %v2643 = vpop.f32.mrb[0].mxu0
        %v2644 = vadd.f32 0.0, %v2643
        %v2645 = vpop.f32.mrb[0].mxu0
        %2646 = vmatprep.mubr.f32.mxu0 0.0
        %2647 = vmatmul.mubr.f32.gmra.mrb[0].mxu0 %v2099
        %v2648 = vpop.f32.mrb[0].mxu0
        %v2649 = vadd.f32 0.0, %v2648
        %v2650 = vpop.f32.mrb[0].mxu0
        %2651 = vmatprep.mubr.f32.mxu0 0.0
        %2652 = vmatmul.mubr.f32.gmra.mrb[0].mxu0 %v2100
        %v2653 = vpop.f32.mrb[0].mxu0
        %v2654 = vadd.f32 0.0, %v2653
        %v2655 = vpop.f32.mrb[0].mxu0
        %2656 = vmatprep.mubr.f32.mxu0 0.0
        %2657 = vmatmul.mubr.f32.gmra.mrb[0].mxu0 %v2101
        %v2658 = vpop.f32.mrb[0].mxu0
        %v2659 = vadd.f32 0.0, %v2658
        %v2660 = vpop.f32.mrb[0].mxu0
        %2661 = vmatprep.mubr.f32.mxu0 0.0
        %2662 = vmatmul.mubr.f32.gmra.mrb[0].mxu0 %v2102
        %v2663 = vpop.f32.mrb[0].mxu0
        %v2664 = vadd.f32 0.0, %v2663
        %v2665 = vpop.f32.mrb[0].mxu0
        %2666 = vmatprep.mubr.f32.mxu0 0.0
        %2667 = vmatmul.mubr.f32.gmra.mrb[0].mxu0 %v2103
        %v2668 = vpop.f32.mrb[0].mxu0
        %v2669 = vadd.f32 0.0, %v2668
        %v2670 = vpop.f32.mrb[0].mxu0
        %2671 = vmatprep.mubr.f32.mxu0 0.0
        %2672 = vmatmul.mubr.f32.gmra.mrb[0].mxu0 %v2104
        %v2673 = vpop.f32.mrb[0].mxu0
        %v2674 = vadd.f32 0.0, %v2673
        %v2675 = vpop.f32.mrb[0].mxu0
        %2676 = vmatprep.mubr.f32.mxu0 0.0
        %2677 = vmatmul.mubr.f32.gmra.mrb[0].mxu0 %v2105
        %v2678 = vpop.f32.mrb[0].mxu0
        %v2679 = vadd.f32 0.0, %v2678
        %v2680 = vpop.f32.mrb[0].mxu0
        %2681 = vmatprep.mubr.f32.mxu0 0.0
        %2682 = vmatmul.mubr.f32.gmra.mrb[0].mxu0 %v2106
        %v2683 = vpop.f32.mrb[0].mxu0
        %v2684 = vadd.f32 0.0, %v2683
        %v2685 = vpop.f32.mrb[0].mxu0
        %2686 = vdwg.mxu0
        %2687 = vst.msk [vmem:[%s305] sm:$0xff] %vm502, %v2174
        %2688 = vst.msk [vmem:[%s305 + $0x8] sm:$0xff] %vm502, %v2179
        %2689 = vst.msk [vmem:[%s305 + $0x10] sm:$0xff] %vm502, %v2184
        %2690 = vst.msk [vmem:[%s305 + $0x18] sm:$0xff] %vm502, %v2189
        %2691 = vst.msk [vmem:[%s305 + $0x20] sm:$0xff] %vm502, %v2194
        %2692 = vst.msk [vmem:[%s305 + $0x28] sm:$0xff] %vm502, %v2199
        %2693 = vst.msk [vmem:[%s305 + $0x30] sm:$0xff] %vm502, %v2204
        %2694 = vst.msk [vmem:[%s305 + $0x38] sm:$0xff] %vm502, %v2209
        %2695 = vst.msk [vmem:[%s305 + $0x40] sm:$0xff] %vm502, %v2214
        %2696 = vst.msk [vmem:[%s305 + $0x48] sm:$0xff] %vm502, %v2219
        %2697 = vst.msk [vmem:[%s305 + $0x50] sm:$0xff] %vm502, %v2224
        %2698 = vst.msk [vmem:[%s305 + $0x58] sm:$0xff] %vm502, %v2229
        %2699 = vst.msk [vmem:[%s305 + $0x60] sm:$0xff] %vm502, %v2234
        %2700 = vst.msk [vmem:[%s305 + $0x68] sm:$0xff] %vm502, %v2239
        %2701 = vst.msk [vmem:[%s305 + $0x70] sm:$0xff] %vm502, %v2244
        %2702 = vst.msk [vmem:[%s305 + $0x78] sm:$0xff] %vm502, %v2249
        %2703 = vst.msk [vmem:[%s305 + $0x80] sm:$0xff] %vm502, %v2319
        %2704 = vst.msk [vmem:[%s305 + $0x88] sm:$0xff] %vm502, %v2324
        %2705 = vst.msk [vmem:[%s305 + $0x90] sm:$0xff] %vm502, %v2329
        %2706 = vst.msk [vmem:[%s305 + $0x98] sm:$0xff] %vm502, %v2334
        %2707 = vst.msk [vmem:[%s305 + $0xa0] sm:$0xff] %vm502, %v2339
        %2708 = vst.msk [vmem:[%s305 + $0xa8] sm:$0xff] %vm502, %v2344
        %2709 = vst.msk [vmem:[%s305 + $0xb0] sm:$0xff] %vm502, %v2349
        %2710 = vst.msk [vmem:[%s305 + $0xb8] sm:$0xff] %vm502, %v2354
        %2711 = vst.msk [vmem:[%s305 + $0xc0] sm:$0xff] %vm502, %v2359
        %2712 = vst.msk [vmem:[%s305 + $0xc8] sm:$0xff] %vm502, %v2364
        %2713 = vst.msk [vmem:[%s305 + $0xd0] sm:$0xff] %vm502, %v2369
        %2714 = vst.msk [vmem:[%s305 + $0xd8] sm:$0xff] %vm502, %v2374
        %2715 = vst.msk [vmem:[%s305 + $0xe0] sm:$0xff] %vm502, %v2379
        %2716 = vst.msk [vmem:[%s305 + $0xe8] sm:$0xff] %vm502, %v2384
        %2717 = vst.msk [vmem:[%s305 + $0xf0] sm:$0xff] %vm502, %v2389
        %2718 = vst.msk [vmem:[%s305 + $0xf8] sm:$0xff] %vm502, %v2394
        %2719 = vst.msk [vmem:[%s305 + $0x100] sm:$0xff] %vm502, %v2464
        %2720 = vst.msk [vmem:[%s305 + $0x108] sm:$0xff] %vm502, %v2469
        %2721 = vst.msk [vmem:[%s305 + $0x110] sm:$0xff] %vm502, %v2474
        %2722 = vst.msk [vmem:[%s305 + $0x118] sm:$0xff] %vm502, %v2479
        %2723 = vst.msk [vmem:[%s305 + $0x120] sm:$0xff] %vm502, %v2484
        %2724 = vst.msk [vmem:[%s305 + $0x128] sm:$0xff] %vm502, %v2489
        %2725 = vst.msk [vmem:[%s305 + $0x130] sm:$0xff] %vm502, %v2494
        %2726 = vst.msk [vmem:[%s305 + $0x138] sm:$0xff] %vm502, %v2499
        %2727 = vst.msk [vmem:[%s305 + $0x140] sm:$0xff] %vm502, %v2504
        %2728 = vst.msk [vmem:[%s305 + $0x148] sm:$0xff] %vm502, %v2509
        %2729 = vst.msk [vmem:[%s305 + $0x150] sm:$0xff] %vm502, %v2514
        %2730 = vst.msk [vmem:[%s305 + $0x158] sm:$0xff] %vm502, %v2519
        %2731 = vst.msk [vmem:[%s305 + $0x160] sm:$0xff] %vm502, %v2524
        %2732 = vst.msk [vmem:[%s305 + $0x168] sm:$0xff] %vm502, %v2529
        %2733 = vst.msk [vmem:[%s305 + $0x170] sm:$0xff] %vm502, %v2534
        %2734 = vst.msk [vmem:[%s305 + $0x178] sm:$0xff] %vm502, %v2539
        %2735 = vst.msk [vmem:[%s305 + $0x180] sm:$0xff] %vm502, %v2609
        %2736 = vst.msk [vmem:[%s305 + $0x188] sm:$0xff] %vm502, %v2614
        %2737 = vst.msk [vmem:[%s305 + $0x190] sm:$0xff] %vm502, %v2619
        %2738 = vst.msk [vmem:[%s305 + $0x198] sm:$0xff] %vm502, %v2624
        %2739 = vst.msk [vmem:[%s305 + $0x1a0] sm:$0xff] %vm502, %v2629
        %2740 = vst.msk [vmem:[%s305 + $0x1a8] sm:$0xff] %vm502, %v2634
        %2741 = vst.msk [vmem:[%s305 + $0x1b0] sm:$0xff] %vm502, %v2639
        %2742 = vst.msk [vmem:[%s305 + $0x1b8] sm:$0xff] %vm502, %v2644
        %2743 = vst.msk [vmem:[%s305 + $0x1c0] sm:$0xff] %vm502, %v2649
        %2744 = vst.msk [vmem:[%s305 + $0x1c8] sm:$0xff] %vm502, %v2654
        %2745 = vst.msk [vmem:[%s305 + $0x1d0] sm:$0xff] %vm502, %v2659
        %2746 = vst.msk [vmem:[%s305 + $0x1d8] sm:$0xff] %vm502, %v2664
        %2747 = vst.msk [vmem:[%s305 + $0x1e0] sm:$0xff] %vm502, %v2669
        %2748 = vst.msk [vmem:[%s305 + $0x1e8] sm:$0xff] %vm502, %v2674
        %2749 = vst.msk [vmem:[%s305 + $0x1f0] sm:$0xff] %vm502, %v2679
        %2750 = vst.msk [vmem:[%s305 + $0x1f8] sm:$0xff] %vm502, %v2684
        %2751 = vst [vmem:[%s269] sm:$0xff] %v2043
        %2752 = vst [vmem:[%s269 + $0x8] sm:$0xff] %v2044
        %2753 = vst [vmem:[%s269 + $0x10] sm:$0xff] %v2045
        %2754 = vst [vmem:[%s269 + $0x18] sm:$0xff] %v2046
        %2755 = vst [vmem:[%s269 + $0x20] sm:$0xff] %v2047
        %2756 = vst [vmem:[%s269 + $0x28] sm:$0xff] %v2048
        %2757 = vst [vmem:[%s269 + $0x30] sm:$0xff] %v2049
        %2758 = vst [vmem:[%s269 + $0x38] sm:$0xff] %v2050
        %2759 = vst [vmem:[%s269 + $0x40] sm:$0xff] %v2051
        %2760 = vst [vmem:[%s269 + $0x48] sm:$0xff] %v2052
        %2761 = vst [vmem:[%s269 + $0x50] sm:$0xff] %v2053
        %2762 = vst [vmem:[%s269 + $0x58] sm:$0xff] %v2054
        %2763 = vst [vmem:[%s269 + $0x60] sm:$0xff] %v2055
        %2764 = vst [vmem:[%s269 + $0x68] sm:$0xff] %v2056
        %2765 = vst [vmem:[%s269 + $0x70] sm:$0xff] %v2057
        %2766 = vst [vmem:[%s269 + $0x78] sm:$0xff] %v2058
        %2767 = vst [vmem:[%s269 + $0x80] sm:$0xff] %v2059
        %2768 = vst [vmem:[%s269 + $0x88] sm:$0xff] %v2060
        %2769 = vst [vmem:[%s269 + $0x90] sm:$0xff] %v2061
        %2770 = vst [vmem:[%s269 + $0x98] sm:$0xff] %v2062
        %2771 = vst [vmem:[%s269 + $0xa0] sm:$0xff] %v2063
        %2772 = vst [vmem:[%s269 + $0xa8] sm:$0xff] %v2064
        %2773 = vst [vmem:[%s269 + $0xb0] sm:$0xff] %v2065
        %2774 = vst [vmem:[%s269 + $0xb8] sm:$0xff] %v2066
        %2775 = vst [vmem:[%s269 + $0xc0] sm:$0xff] %v2067
        %2776 = vst [vmem:[%s269 + $0xc8] sm:$0xff] %v2068
        %2777 = vst [vmem:[%s269 + $0xd0] sm:$0xff] %v2069
        %2778 = vst [vmem:[%s269 + $0xd8] sm:$0xff] %v2070
        %2779 = vst [vmem:[%s269 + $0xe0] sm:$0xff] %v2071
        %2780 = vst [vmem:[%s269 + $0xe8] sm:$0xff] %v2072
        %2781 = vst [vmem:[%s269 + $0xf0] sm:$0xff] %v2073
        %2782 = vst [vmem:[%s269 + $0xf8] sm:$0xff] %v2074
        %2783 = vst [vmem:[%s269 + $0x100] sm:$0xff] %v2075
        %2784 = vst [vmem:[%s269 + $0x108] sm:$0xff] %v2076
        %2785 = vst [vmem:[%s269 + $0x110] sm:$0xff] %v2077
        %2786 = vst [vmem:[%s269 + $0x118] sm:$0xff] %v2078
        %2787 = vst [vmem:[%s269 + $0x120] sm:$0xff] %v2079
        %2788 = vst [vmem:[%s269 + $0x128] sm:$0xff] %v2080
        %2789 = vst [vmem:[%s269 + $0x130] sm:$0xff] %v2081
        %2790 = vst [vmem:[%s269 + $0x138] sm:$0xff] %v2082
        %2791 = vst [vmem:[%s269 + $0x140] sm:$0xff] %v2083
        %2792 = vst [vmem:[%s269 + $0x148] sm:$0xff] %v2084
        %2793 = vst [vmem:[%s269 + $0x150] sm:$0xff] %v2085
        %2794 = vst [vmem:[%s269 + $0x158] sm:$0xff] %v2086
        %2795 = vst [vmem:[%s269 + $0x160] sm:$0xff] %v2087
        %2796 = vst [vmem:[%s269 + $0x168] sm:$0xff] %v2088
        %2797 = vst [vmem:[%s269 + $0x170] sm:$0xff] %v2089
        %2798 = vst [vmem:[%s269 + $0x178] sm:$0xff] %v2090
        %2799 = vst [vmem:[%s269 + $0x180] sm:$0xff] %v2091
        %2800 = vst [vmem:[%s269 + $0x188] sm:$0xff] %v2092
        %2801 = vst [vmem:[%s269 + $0x190] sm:$0xff] %v2093
        %2802 = vst [vmem:[%s269 + $0x198] sm:$0xff] %v2094
        %2803 = vst [vmem:[%s269 + $0x1a0] sm:$0xff] %v2095
        %2804 = vst [vmem:[%s269 + $0x1a8] sm:$0xff] %v2096
        %2805 = vst [vmem:[%s269 + $0x1b0] sm:$0xff] %v2097
        %2806 = vst [vmem:[%s269 + $0x1b8] sm:$0xff] %v2098
        %2807 = vst [vmem:[%s269 + $0x1c0] sm:$0xff] %v2099
        %2808 = vst [vmem:[%s269 + $0x1c8] sm:$0xff] %v2100
        %2809 = vst [vmem:[%s269 + $0x1d0] sm:$0xff] %v2101
        %2810 = vst [vmem:[%s269 + $0x1d8] sm:$0xff] %v2102
        %2811 = vst [vmem:[%s269 + $0x1e0] sm:$0xff] %v2103
        %2812 = vst [vmem:[%s269 + $0x1e8] sm:$0xff] %v2104
        %2813 = vst [vmem:[%s269 + $0x1f0] sm:$0xff] %v2105
        %2814 = vst [vmem:[%s269 + $0x1f8] sm:$0xff] %v2106
        %s2815 = smul.u32 4, %s23
        %s2816 = smul.u32 16, %s24
        %p2817 = scmp.lt.s32.totalorder %s2815, 7
        %s2818 = scalar_select %p2817, %s2815, 7
        %p2819 = scmp.lt.s32.totalorder %s2816, 15
        %s2820 = scalar_select %p2819, %s2816, 15
        %s2821 = smul.addr %s2818, 16
        %s2822 = sadd.s32 %s2820, %s2821
        %s2823 = smul.addr %s2822, 8
        %s2824 = scalar_lea.vmem %s3, %s2823
        %s2825 = sand.u32 %s149, 1
        %s2826 = scalar_lea.sflag [#allocation3], %s2825
        %s2827 = sand.u32 %s149, 1
        %s2828 = smul.addr %s2827, 512
        %s2829 = scalar_lea.vmem [#allocation2], %s2828
        // Predicated region
        $region33: #{tpu_custom_call.1} parent=31 // pred_check
          %p2830 = pneg %p131
        $region34: #{tpu_custom_call.1} parent=31 // pred_check_branch
          %2832 = sbr.rel (%p2830) target = $region36
        $region35: #{tpu_custom_call.1} parent=31 // pred_region
          %s2833 = smul.u32 4, %s23
          %s2834 = smul.u32 16, %s24
        $region36: #{tpu_custom_call.1} parent=31 // pred_fallthru
          _
        // Predicated region
        $region37: #{tpu_custom_call.1} parent=31 // pred_check
          %p2835 = pneg %p159
        $region38: #{tpu_custom_call.1} parent=31 // pred_check_branch
          %2837 = sbr.rel (%p2835) target = $region40
        $region39: #{tpu_custom_call.1} parent=31 // pred_region
          %s2838 = smul.u32 4, %s23
          %s2839 = smul.u32 16, %s24
          %s2841 = ssub.s32 8192, 8192
          %2842 = vsyncadd %s2826, %s2841
          %s2843 = smul.addr %s2838, 16
          %s2844 = sadd.s32 %s2839, %s2843
          %s2845 = smul.addr %s2844, 128
          %s2846 = scalar_lea.hbm %s4, %s2845
          %s2847 = sshll.u32 %s2829, 4
          %s2848 = int_to_ptr.vmem [resolvable:$true] %s2847
          %2853 = dma.vmem_to_hbm [thread:$0]  %s2848, 8192, %s2846, %s2826, 128, 128, 8
        $region40: #{tpu_custom_call.1} parent=31 // pred_fallthru
          _
      $region32: #{tpu_custom_call.1} parent=5 // pred_fallthru
        _
      %p2854 = scmp.le.s32.totalorder 2, %s14
      // Predicated region
      $region41: #{tpu_custom_call.1} parent=5 // pred_check
        %p2855 = pneg %p2854
      $region42: #{tpu_custom_call.1} parent=5 // pred_check_branch
        %2857 = sbr.rel (%p2855) target = $region44
      $region43: #{tpu_custom_call.1} parent=5 // pred_region
        %s2858 = ssub.s32 %s14, 2
        // Predicated region
        $region45: #{tpu_custom_call.1} parent=43 // pred_check
          %p2859 = pneg %p137
        $region46: #{tpu_custom_call.1} parent=43 // pred_check_branch
          %2861 = sbr.rel (%p2859) target = $region48
        $region47: #{tpu_custom_call.1} parent=43 // pred_region
          %s2862 = smul.u32 4, %s25
          %s2863 = smul.u32 16, %s26
          %p2864 = scmp.lt.s32.totalorder %s2862, 7
          %s2865 = scalar_select %p2864, %s2862, 7
          %p2866 = scmp.lt.s32.totalorder %s2863, 15
          %s2867 = scalar_select %p2866, %s2863, 15
          %s2868 = smul.addr %s2865, 16
          %s2869 = sadd.s32 %s2867, %s2868
          %s2870 = smul.addr %s2869, 8
          %s2871 = scalar_lea.vmem %s3, %s2870
        $region48: #{tpu_custom_call.1} parent=43 // pred_fallthru
          _
        // Predicated region
        $region49: #{tpu_custom_call.1} parent=43 // pred_check
          %p2872 = pneg %p165
        $region50: #{tpu_custom_call.1} parent=43 // pred_check_branch
          %2874 = sbr.rel (%p2872) target = $region52
        $region51: #{tpu_custom_call.1} parent=43 // pred_region
          %s2875 = sand.u32 %s150, 1
          %s2876 = scalar_lea.sflag [#allocation3], %s2875
          %s2877 = sand.u32 %s150, 1
          %s2878 = smul.addr %s2877, 512
          %s2879 = scalar_lea.vmem [#allocation2], %s2878
          %2880 = dma.done %s2876, 8192
        $region52: #{tpu_custom_call.1} parent=43 // pred_fallthru
          _
      $region44: #{tpu_custom_call.1} parent=5 // pred_fallthru
        _
    $region6: #{tpu_custom_call.1} parent=1 // loop_footer
      %s18 = sadd.s32 1, %s14
    $region7: #{tpu_custom_call.1} parent=1 // loop_footer_branch
      %13 = sbr.rel target = $region3
    $region8: #{tpu_custom_call.1} parent=1 // loop_exit
      _
    %2881 = vsyncpa [#allocation3], 1
    %s2882 = scalar_lea.sflag [#allocation3], 1
    %2883 = vsyncpa %s2882, 1

</llo_original>
